<compile_context>
chip_gen: v7x
topology: tpu7x:2x2x1
jax: 0.10.0
libtpu: 0.0.40
codegen_flags: <defaults>
</compile_context>

<pallas_src>
import functools

import jax
import jax.numpy as jnp
from jax import lax
from jax.experimental import pallas as pl
from jax.experimental.pallas import tpu as pltpu


def _round_up(x, m):
    return ((x + m - 1) // m) * m


# 2-D dot_general contraction patterns (no batch dims).
_CONTRACT_DIM0 = (((0,), (0,)), ((), ()))   # contract leading (sublane) dims: lhs^T @ rhs
_CONTRACT_DIM1 = (((1,), (1,)), ((), ()))   # contract trailing (lane) dims:   lhs @ rhs^T


def _ram_head_kernel(x_ref, ds_ref,
                     wq_ref, bq_ref, wkv_ref, bkv_ref, wre_ref, bre_ref,
                     out_ref, kv_ref, *, nkv, hidden, mm_dtype):
    # Channels-first tokens (lane axis = tokens):
    #   x_ref  : (C, tq)        full-res roi tokens for this q tile
    #   ds_ref : (C, Nkv_p)     pooled roi tokens (same block every step -> resident)
    #   kv_ref : (2*hidden, Nkv_p) VMEM scratch; k/v cache, valid across q tiles
    j = pl.program_id(2)

    # Fused K/V projection, computed once per (batch, parallel-split) group.
    @pl.when(j == 0)
    def _():
        ds = ds_ref[...]
        kv = lax.dot_general(wkv_ref[...], ds, _CONTRACT_DIM0,
                             preferred_element_type=jnp.float32) + bkv_ref[...]
        kv_ref[...] = kv.astype(kv_ref.dtype)

    x = x_ref[...]                                                  # (C, tq)
    q = lax.dot_general(wq_ref[...], x, _CONTRACT_DIM0,
                        preferred_element_type=jnp.float32) + bq_ref[...]   # (hid, tq)

    k = kv_ref[0:hidden, :]                                         # (hid, Nkv_p)
    v = kv_ref[hidden:2 * hidden, :]                                # (hid, Nkv_p)

    # scores = q^T k -> (tq, Nkv_p); MXU consumes operands directly (no .T copy).
    s = lax.dot_general(q.astype(mm_dtype), k, _CONTRACT_DIM0,
                        preferred_element_type=jnp.float32)

    nkv_p = s.shape[-1]
    if nkv_p > nkv:  # static: mask padded kv columns before the softmax
        col = lax.broadcasted_iota(jnp.int32, s.shape, 1)
        s = jnp.where(col < nkv, s, -jnp.inf)
    # NOTE: with static shapes every row has >= 1 valid kv column, so the -inf
    # masking can never make the softmax below produce NaN.

    # softmax over kv (lane axis); elementwise math in f32 (v5e-friendly).
    s = s - jnp.max(s, axis=-1, keepdims=True)
    p = jnp.exp(s)
    inv_l = pl.reciprocal(jnp.sum(p, axis=-1, keepdims=True), approx=False)  # EUP, exact
    p = p * inv_l

    # y = v @ p^T -> (hid, tq)
    y = lax.dot_general(v, p.astype(mm_dtype), _CONTRACT_DIM1,
                        preferred_element_type=jnp.float32)

    # output 1x1 conv (hidden -> C) + residual, channels-first: (C, tq)
    o = lax.dot_general(wre_ref[...], y.astype(wre_ref.dtype), _CONTRACT_DIM0,
                        preferred_element_type=jnp.float32) + bre_ref[...]
    out_ref[...] = (x.astype(jnp.float32) + o).astype(out_ref.dtype)


def _vmem_capacity_bytes():
    try:
        return int(pltpu.get_tpu_info().vmem_capacity_bytes)
    except Exception:
        return 64 * 1024 * 1024   # conservative default (v7x per-TC VMEM)


def _vmem_estimate(tq, C, hidden, nkv_p, act_isz, mm_isz):
    """Rough per-step VMEM footprint (bytes) used for tile selection."""
    bufs = 2 * C * tq * act_isz            # x tile, double-buffered
    bufs += 2 * C * tq * act_isz           # out tile, double-buffered
    bufs += 2 * C * nkv_p * act_isz        # ds block (resident but buffered)
    weights = (C * hidden + C * 2 * hidden + hidden * C) * act_isz + (3 * hidden + C) * 4
    scratch = 2 * hidden * nkv_p * mm_isz  # kv cache scratch
    inter = 4 * (2 * hidden * tq + 2 * tq * nkv_p + 2 * C * tq) \
            + mm_isz * (tq * nkv_p + hidden * tq)   # live f32 temps + casts (upper bound)
    return bufs + weights + scratch + inter


def ram_head_forward(rois, feature, params, *, use_bf16_matmul=False):
    """rois: (BS*roinum, C, h, w) NCHW; feature: (BS, C, H, W) NCHW (only BS used)."""
    BS = feature.shape[0]
    BSr, C, h, w = rois.shape
    roinum = BSr // BS
    hidden = params["wq"].shape[1]
    _h, _w = h // 2, w // 2
    Nq = roinum * h * w
    Nkv = roinum * _h * _w
    dt = rois.dtype
    act_isz = jnp.dtype(dt).itemsize

    # dtype for the two large (tq x Nkv_p output) matmuls (score, PV).
    mm_dt = jnp.bfloat16 if (use_bf16_matmul or dt == jnp.bfloat16) else jnp.float32
    mm_isz = jnp.dtype(mm_dt).itemsize

    # XLA glue: one channels-first relayout; the pooled ds is derived from the
    # same view so pool + relayout fuse into a single pass over rois.
    x5 = rois.reshape(BS, roinum, C, h, w).transpose(0, 2, 1, 3, 4)   # (BS,C,roi,h,w)
    x_cf = x5.reshape(BS, C, Nq)
    ds_cf = x5.reshape(BS, C, roinum, _h, 2, _w, 2).max(axis=(4, 6)).reshape(BS, C, Nkv)

    # Lane-align the kv token axis (padded columns masked with -inf in-kernel).
    Nkv_p = _round_up(Nkv, 128)
    if Nkv_p > Nkv:
        ds_cf = jnp.pad(ds_cf, ((0, 0), (0, 0), (0, Nkv_p - Nkv)))

    # Generation-aware tile selection / VMEM budget.
    cap = _vmem_capacity_bytes()
    budget = max(cap - (24 << 20), 32 << 20)   # ~40 MiB on v7x, ~104 MiB on v5e/v6e
    tq = 128
    for cand in (4096, 2048, 1024, 512, 256, 128):
        if cand <= _round_up(Nq, 128) and \
           _vmem_estimate(cand, C, hidden, Nkv_p, act_isz, mm_isz) <= budget:
            tq = cand
            break
    Nq_p = _round_up(Nq, tq)
    if Nq_p > Nq:
        x_cf = jnp.pad(x_cf, ((0, 0), (0, 0), (0, Nq_p - Nq)))
    est = _vmem_estimate(tq, C, hidden, Nkv_p, act_isz, mm_isz)
    vmem_limit = int(min(max(est + (8 << 20), 32 << 20),
                         max(cap - (16 << 20), 32 << 20)))

    # Weights in the activation dtype; biases stay f32 (column vectors for
    # channels-first broadcast). Wk/Wv and bk/bv are fused.
    wq = params["wq"].astype(dt)                                           # (C, hid)
    wkv = jnp.concatenate([params["wk"], params["wv"]], axis=1).astype(dt) # (C, 2*hid)
    wre = params["wre"].astype(dt)                                         # (hid, C)
    bq = params["bq"].reshape(hidden, 1).astype(jnp.float32)
    bkv = jnp.concatenate([params["bk"], params["bv"]]).reshape(2 * hidden, 1).astype(jnp.float32)
    bre = params["bre"].reshape(C, 1).astype(jnp.float32)

    n_tiles = Nq_p // tq
    # Keep >=2 steps on a parallel axis for v7x's two TensorCores when BS == 1.
    P = 2 if (BS == 1 and n_tiles >= 2 and n_tiles % 2 == 0) else 1
    n_inner = n_tiles // P
    grid = (BS, P, n_inner)

    wspec = pl.BlockSpec(memory_space=pltpu.MemorySpace.VMEM)
    x_map = lambda b, p, j: (b, 0, p * n_inner + j)
    ds_map = lambda b, p, j: (b, 0, 0)

    out_cf = pl.pallas_call(
        functools.partial(_ram_head_kernel, nkv=Nkv, hidden=hidden, mm_dtype=mm_dt),
        out_shape=jax.ShapeDtypeStruct((BS, C, Nq_p), dt),
        grid=grid,
        in_specs=[
            pl.BlockSpec((None, C, tq), x_map),        # x tile (channels-first)
            pl.BlockSpec((None, C, Nkv_p), ds_map),    # ds (per batch, resident)
            wspec, wspec, wspec, wspec, wspec, wspec,  # wq, bq, wkv, bkv, wre, bre
        ],
        out_specs=pl.BlockSpec((None, C, tq), x_map),
        scratch_shapes=[pltpu.VMEM((2 * hidden, Nkv_p), mm_dt)],   # k/v cache
        compiler_params=pltpu.CompilerParams(
            dimension_semantics=("parallel", "parallel", "arbitrary"),
            vmem_limit_bytes=vmem_limit),
    )(x_cf, ds_cf, wq, bq, wkv, bkv, wre, bre)

    # channels-first tokens -> NCHW (BS*roinum, C, h, w)
    out = out_cf[:, :, :Nq].reshape(BS, C, roinum, h * w)
    out = out.transpose(0, 2, 1, 3).reshape(BS * roinum, C, h, w)
    return out


def ram_head_reference(rois, feature, params):
    """Pure-JAX reference mirroring the PyTorch forward (for validation)."""
    BS = feature.shape[0]
    BSr, C, h, w = rois.shape
    roinum = BSr // BS
    hidden = params["wq"].shape[1]
    _h, _w = h // 2, w // 2

    def conv1x1(x_nchw, wt, b):  # wt: (Cin, Cout), b: (Cout,)
        return jnp.einsum("nchw,cd->ndhw", x_nchw, wt) + b.reshape(1, -1, 1, 1)

    q = conv1x1(rois, params["wq"], params["bq"])
    q = q.transpose(0, 2, 3, 1).reshape(BS, roinum * h * w, hidden)
    ds = rois.reshape(BSr, C, _h, 2, _w, 2).max(axis=(3, 5))
    k = conv1x1(ds, params["wk"], params["bk"])
    k = k.transpose(0, 2, 3, 1).reshape(BS, roinum * _h * _w, hidden)
    v = conv1x1(ds, params["wv"], params["bv"])
    v = v.transpose(0, 2, 3, 1).reshape(BS, roinum * _h * _w, hidden)
    score = jnp.einsum("bqd,bkd->bqk", q, k)
    score = jax.nn.softmax(score, axis=2)
    y = jnp.einsum("bqk,bkd->bqd", score, v)
    y = y.reshape(BS * roinum, h, w, hidden).transpose(0, 3, 1, 2)
    y = conv1x1(y, params["wre"], params["bre"])
    return rois + y


def init_params(key, feat_channel, hidden_channel):
    """Deterministic init mirroring kaiming_uniform_(a=1) / zero bias."""
    ks = jax.random.split(key, 4)

    def kaiming_uniform(k, fan_in, shape):
        # gain = sqrt(2/(1+a^2)) = 1 for a=1 ; bound = gain * sqrt(3/fan_in)
        bound = (3.0 / fan_in) ** 0.5
        return jax.random.uniform(k, shape, jnp.float32, -bound, bound)

    return dict(
        wq=kaiming_uniform(ks[0], feat_channel, (feat_channel, hidden_channel)),
        bq=jnp.zeros((hidden_channel,), jnp.float32),
        wk=kaiming_uniform(ks[1], feat_channel, (feat_channel, hidden_channel)),
        bk=jnp.zeros((hidden_channel,), jnp.float32),
        wv=kaiming_uniform(ks[2], feat_channel, (feat_channel, hidden_channel)),
        bv=jnp.zeros((hidden_channel,), jnp.float32),
        wre=kaiming_uniform(ks[3], hidden_channel, (hidden_channel, feat_channel)),
        bre=jnp.zeros((feat_channel,), jnp.float32),
    )


if __name__ == "__main__":
    # Small shapes consistent with the module:
    #   feature: (BS, C, H, W) = (2, 4, 16, 16)
    #   rois:    (BS*roinum, C, h, w) = (4, 4, 8, 8)   (roinum = 2)
    BS, roinum = 2, 2
    feat_channel, hidden_channel = 4, 32
    H = W = 16
    h = w = 8

    key = jax.random.PRNGKey(0)
    k_rois, k_feat, k_params = jax.random.split(key, 3)
    rois = jax.random.normal(k_rois, (BS * roinum, feat_channel, h, w), jnp.float32)
    feature = jax.random.normal(k_feat, (BS, feat_channel, H, W), jnp.float32)
    params = init_params(k_params, feat_channel, hidden_channel)

    out = ram_head_forward(rois, feature, params)
    out = jax.block_until_ready(out)

    ref = jax.block_until_ready(ram_head_reference(rois, feature, params))
    assert out.shape == rois.shape
    # Tolerance covers MXU vs default-precision XLA einsum differences only;
    # the softmax reciprocal is exact (approx=False).
    assert jnp.allclose(out, ref, atol=2e-3, rtol=2e-3), "mismatch vs JAX reference"

    print("KERNEL_OK")
</pallas_src>

<mosaic_0001>
module attributes {stable_mosaic.version = 11 : i64} {
  func.func @_ram_head_kernel(%arg0: i32, %arg1: i32, %arg2: i32, %arg3: memref<1x4x128xf32, #tpu.memory_space<vmem>>, %arg4: memref<1x4x128xf32, #tpu.memory_space<vmem>>, %arg5: memref<4x32xf32, #tpu.memory_space<vmem>>, %arg6: memref<32x1xf32, #tpu.memory_space<vmem>>, %arg7: memref<4x64xf32, #tpu.memory_space<vmem>>, %arg8: memref<64x1xf32, #tpu.memory_space<vmem>>, %arg9: memref<32x4xf32, #tpu.memory_space<vmem>>, %arg10: memref<4x1xf32, #tpu.memory_space<vmem>>, %arg11: memref<1x4x128xf32, #tpu.memory_space<vmem>>, %arg12: memref<64x128xf32, #tpu.memory_space<vmem>>) attributes {dimension_semantics = [#tpu.dimension_semantics<parallel>, #tpu.dimension_semantics<parallel>, #tpu.dimension_semantics<arbitrary>], iteration_bounds = array<i64: 2, 1, 1>, scalar_prefetch = 0 : i64, scratch_operands = 1 : i64, tpu.core_type = #tpu.core_type<tc>, window_params = [{transform_indices = @transform_0, window_bounds = array<i64: 1, 4, 128>}, {transform_indices = @transform_1, window_bounds = array<i64: 1, 4, 128>}, {pipeline_mode = #tpu.pipeline_mode<synchronous>, transform_indices = @transform_2, window_bounds = array<i64: 4, 32>}, {pipeline_mode = #tpu.pipeline_mode<synchronous>, transform_indices = @transform_3, window_bounds = array<i64: 32, 1>}, {pipeline_mode = #tpu.pipeline_mode<synchronous>, transform_indices = @transform_4, window_bounds = array<i64: 4, 64>}, {pipeline_mode = #tpu.pipeline_mode<synchronous>, transform_indices = @transform_5, window_bounds = array<i64: 64, 1>}, {pipeline_mode = #tpu.pipeline_mode<synchronous>, transform_indices = @transform_6, window_bounds = array<i64: 32, 4>}, {pipeline_mode = #tpu.pipeline_mode<synchronous>, transform_indices = @transform_7, window_bounds = array<i64: 4, 1>}, {transform_indices = @transform_8, window_bounds = array<i64: 1, 4, 128>}]} {
    %c0_i32 = arith.constant 0 : i32
    %0 = arith.cmpi eq, %arg2, %c0_i32 : i32
    %1 = arith.extui %0 : i1 to i32
    %c0_i32_0 = arith.constant 0 : i32
    %2 = arith.cmpi ne, %1, %c0_i32_0 : i32
    scf.if %2 {
      %c0_23 = arith.constant 0 : index
      %c0_24 = arith.constant 0 : index
      %c0_25 = arith.constant 0 : index
      %38 = vector.load %arg4[%c0_23, %c0_24, %c0_25] : memref<1x4x128xf32, #tpu.memory_space<vmem>>, vector<1x4x128xf32>
      %39 = vector.shape_cast %38 : vector<1x4x128xf32> to vector<4x128xf32>
      %c0_26 = arith.constant 0 : index
      %c0_27 = arith.constant 0 : index
      %40 = vector.load %arg7[%c0_26, %c0_27] : memref<4x64xf32, #tpu.memory_space<vmem>>, vector<4x64xf32>
      %cst_28 = arith.constant dense<0.000000e+00> : vector<64x128xf32>
      %41 = tpu.matmul %40, %39, %cst_28 {dimension_numbers = #tpu.dot_dimension_numbers<[0], [0], [1], [1], [0, 1, 1, 1], [], []>} : vector<4x64xf32>, vector<4x128xf32>, vector<64x128xf32> -> vector<64x128xf32>
      %c0_29 = arith.constant 0 : index
      %c0_30 = arith.constant 0 : index
      %42 = vector.load %arg8[%c0_29, %c0_30] : memref<64x1xf32, #tpu.memory_space<vmem>>, vector<64x1xf32>
      %43 = vector.broadcast %42 : vector<64x1xf32> to vector<64x128xf32>
      %44 = arith.addf %41, %43 : vector<64x128xf32>
      %c0_31 = arith.constant 0 : index
      %c0_32 = arith.constant 0 : index
      %45 = vector.load %arg12[%c0_31, %c0_32] : memref<64x128xf32, #tpu.memory_space<vmem>>, vector<64x128xf32>
      tpu.vector_store %arg12[%c0_31, %c0_32], %44 {strides = array<i32>} : memref<64x128xf32, #tpu.memory_space<vmem>>, vector<64x128xf32>,
    } else {
    }
    %c0 = arith.constant 0 : index
    %c0_1 = arith.constant 0 : index
    %c0_2 = arith.constant 0 : index
    %3 = vector.load %arg3[%c0, %c0_1, %c0_2] : memref<1x4x128xf32, #tpu.memory_space<vmem>>, vector<1x4x128xf32>
    %4 = vector.shape_cast %3 : vector<1x4x128xf32> to vector<4x128xf32>
    %c0_3 = arith.constant 0 : index
    %c0_4 = arith.constant 0 : index
    %5 = vector.load %arg5[%c0_3, %c0_4] : memref<4x32xf32, #tpu.memory_space<vmem>>, vector<4x32xf32>
    %cst = arith.constant dense<0.000000e+00> : vector<32x128xf32>
    %6 = tpu.matmul %5, %4, %cst {dimension_numbers = #tpu.dot_dimension_numbers<[0], [0], [1], [1], [0, 1, 1, 1], [], []>} : vector<4x32xf32>, vector<4x128xf32>, vector<32x128xf32> -> vector<32x128xf32>
    %c0_5 = arith.constant 0 : index
    %c0_6 = arith.constant 0 : index
    %7 = vector.load %arg6[%c0_5, %c0_6] : memref<32x1xf32, #tpu.memory_space<vmem>>, vector<32x1xf32>
    %8 = vector.broadcast %7 : vector<32x1xf32> to vector<32x128xf32>
    %9 = arith.addf %6, %8 : vector<32x128xf32>
    %c0_7 = arith.constant 0 : index
    %c0_8 = arith.constant 0 : index
    %10 = vector.load %arg12[%c0_7, %c0_8] : memref<64x128xf32, #tpu.memory_space<vmem>>, vector<32x128xf32>
    %c32 = arith.constant 32 : index
    %c0_9 = arith.constant 0 : index
    %11 = vector.load %arg12[%c32, %c0_9] : memref<64x128xf32, #tpu.memory_space<vmem>>, vector<32x128xf32>
    %cst_10 = arith.constant dense<0.000000e+00> : vector<128x128xf32>
    %12 = tpu.matmul %9, %10, %cst_10 {dimension_numbers = #tpu.dot_dimension_numbers<[0], [0], [1], [1], [0, 1, 1, 1], [], []>} : vector<32x128xf32>, vector<32x128xf32>, vector<128x128xf32> -> vector<128x128xf32>
    %13 = tpu.iota {dimensions = array<i32: 1>} : vector<128x128xi32>
    %c32_i32 = arith.constant 32 : i32
    %14 = vector.broadcast %c32_i32 : i32 to vector<128x128xi32>
    %15 = arith.cmpi slt, %13, %14 : vector<128x128xi32>
    %cst_11 = arith.constant 0xFF800000 : f32
    %16 = vector.broadcast %cst_11 : f32 to vector<128x128xf32>
    %17 = arith.select %15, %12, %16 : vector<128x128xi1>, vector<128x128xf32>
    %cst_12 = arith.constant dense<0xFF800000> : vector<128xf32>
    %18 = vector.multi_reduction <maximumf>, %17, %cst_12 [1] : vector<128x128xf32> to vector<128xf32>
    %19 = vector.shape_cast %18 : vector<128xf32> to vector<128x1xf32>
    %20 = vector.broadcast %19 : vector<128x1xf32> to vector<128x128xf32>
    %21 = arith.subf %17, %20 : vector<128x128xf32>
    %22 = math.exp %21 : vector<128x128xf32>
    %cst_13 = arith.constant dense<0.000000e+00> : vector<128xf32>
    %23 = vector.multi_reduction <add>, %22, %cst_13 [1] : vector<128x128xf32> to vector<128xf32>
    %24 = vector.shape_cast %23 : vector<128xf32> to vector<128x1xf32>
    %25 = tpu.reciprocal %24 : vector<128x1xf32> -> vector<128x1xf32>
    %26 = vector.broadcast %25 : vector<128x1xf32> to vector<128x128xf32>
    %27 = arith.mulf %22, %26 : vector<128x128xf32>
    %cst_14 = arith.constant dense<0.000000e+00> : vector<32x128xf32>
    %28 = tpu.matmul %11, %27, %cst_14 {dimension_numbers = #tpu.dot_dimension_numbers<[1], [1], [0], [0], [0, 0, 1, 0], [], []>} : vector<32x128xf32>, vector<128x128xf32>, vector<32x128xf32> -> vector<32x128xf32>
    %c0_15 = arith.constant 0 : index
    %c0_16 = arith.constant 0 : index
    %29 = vector.load %arg9[%c0_15, %c0_16] : memref<32x4xf32, #tpu.memory_space<vmem>>, vector<32x4xf32>
    %cst_17 = arith.constant dense<0.000000e+00> : vector<4x128xf32>
    %30 = tpu.matmul %29, %28, %cst_17 {dimension_numbers = #tpu.dot_dimension_numbers<[0], [0], [1], [1], [0, 1, 1, 1], [], []>} : vector<32x4xf32>, vector<32x128xf32>, vector<4x128xf32> -> vector<4x128xf32>
    %c0_18 = arith.constant 0 : index
    %c0_19 = arith.constant 0 : index
    %31 = vector.load %arg10[%c0_18, %c0_19] : memref<4x1xf32, #tpu.memory_space<vmem>>, vector<4x1xf32>
    %32 = vector.broadcast %31 : vector<4x1xf32> to vector<4x128xf32>
    %33 = arith.addf %30, %32 : vector<4x128xf32>
    %34 = arith.addf %4, %33 : vector<4x128xf32>
    %c0_20 = arith.constant 0 : index
    %c0_21 = arith.constant 0 : index
    %c0_22 = arith.constant 0 : index
    %35 = vector.load %arg11[%c0_20, %c0_21, %c0_22] : memref<1x4x128xf32, #tpu.memory_space<vmem>>, vector<1x4x128xf32>
    %36 = vector.shape_cast %35 : vector<1x4x128xf32> to vector<4x128xf32>
    %37 = vector.shape_cast %34 : vector<4x128xf32> to vector<1x4x128xf32>
    tpu.vector_store %arg11[%c0_20, %c0_21, %c0_22], %37 {strides = array<i32>} : memref<1x4x128xf32, #tpu.memory_space<vmem>>, vector<1x4x128xf32>,
    return
  }
  func.func @transform_0(%arg0: i32, %arg1: i32, %arg2: i32) -> (i32, i32, i32) {
    %c1_i32 = arith.constant 1 : i32
    %0 = arith.muli %arg1, %c1_i32 : i32
    %1 = arith.addi %0, %arg2 : i32
    %c0_i32 = arith.constant 0 : i32
    %c0_i32_0 = arith.constant 0 : i32
    return %arg0, %c0_i32, %1 : i32, i32, i32
  }
  func.func @transform_1(%arg0: i32, %arg1: i32, %arg2: i32) -> (i32, i32, i32) {
    %c0_i32 = arith.constant 0 : i32
    %c0_i32_0 = arith.constant 0 : i32
    %c0_i32_1 = arith.constant 0 : i32
    return %arg0, %c0_i32, %c0_i32_0 : i32, i32, i32
  }
  func.func @transform_2(%arg0: i32, %arg1: i32, %arg2: i32) -> (i32, i32) {
    %c0_i32 = arith.constant 0 : i32
    %c0_i32_0 = arith.constant 0 : i32
    %c0_i32_1 = arith.constant 0 : i32
    return %c0_i32, %c0_i32_0 : i32, i32
  }
  func.func @transform_3(%arg0: i32, %arg1: i32, %arg2: i32) -> (i32, i32) {
    %c0_i32 = arith.constant 0 : i32
    %c0_i32_0 = arith.constant 0 : i32
    %c0_i32_1 = arith.constant 0 : i32
    return %c0_i32, %c0_i32_0 : i32, i32
  }
  func.func @transform_4(%arg0: i32, %arg1: i32, %arg2: i32) -> (i32, i32) {
    %c0_i32 = arith.constant 0 : i32
    %c0_i32_0 = arith.constant 0 : i32
    %c0_i32_1 = arith.constant 0 : i32
    return %c0_i32, %c0_i32_0 : i32, i32
  }
  func.func @transform_5(%arg0: i32, %arg1: i32, %arg2: i32) -> (i32, i32) {
    %c0_i32 = arith.constant 0 : i32
    %c0_i32_0 = arith.constant 0 : i32
    %c0_i32_1 = arith.constant 0 : i32
    return %c0_i32, %c0_i32_0 : i32, i32
  }
  func.func @transform_6(%arg0: i32, %arg1: i32, %arg2: i32) -> (i32, i32) {
    %c0_i32 = arith.constant 0 : i32
    %c0_i32_0 = arith.constant 0 : i32
    %c0_i32_1 = arith.constant 0 : i32
    return %c0_i32, %c0_i32_0 : i32, i32
  }
  func.func @transform_7(%arg0: i32, %arg1: i32, %arg2: i32) -> (i32, i32) {
    %c0_i32 = arith.constant 0 : i32
    %c0_i32_0 = arith.constant 0 : i32
    %c0_i32_1 = arith.constant 0 : i32
    return %c0_i32, %c0_i32_0 : i32, i32
  }
  func.func @transform_8(%arg0: i32, %arg1: i32, %arg2: i32) -> (i32, i32, i32) {
    %c1_i32 = arith.constant 1 : i32
    %0 = arith.muli %arg1, %c1_i32 : i32
    %1 = arith.addi %0, %arg2 : i32
    %c0_i32 = arith.constant 0 : i32
    %c0_i32_0 = arith.constant 0 : i32
    return %arg0, %c0_i32, %1 : i32, i32, i32
  }
}

</mosaic_0001>

<llo_original>
// kernel: tpu_custom_call.1
$region0: #{tpu_custom_call.1}
  #allocation0 [shape = 'u32[]', space=smem, size = 0x4, offset = 0x4, fixed_abs, tag = 'smem constant byte address 0x4 - core index']
  #allocation1 [shape = 'u32[144,128]{1,0:T(1,128)}', space=vmem, size = 0x12000, scoped, tag = 'internal scratch']
  #allocation2 [shape = 'f32[64,128]{1,0:T(8,128)}', space=vmem, size = 0x8000, scoped, tag = 'scratch operand']
  %s0 = inlined_call_operand.vmem [shape: f32[2,4,128], index: 0, kind: input, shape index: {}]
  %s1 = inlined_call_operand.vmem [shape: f32[2,4,128], index: 1, kind: input, shape index: {}]
  %s2 = inlined_call_operand.vmem [shape: f32[4,32], index: 2, kind: input, shape index: {}]
  %s3 = inlined_call_operand.vmem [shape: f32[32,1], index: 3, kind: input, shape index: {}]
  %s4 = inlined_call_operand.vmem [shape: f32[4,64], index: 4, kind: input, shape index: {}]
  %s5 = inlined_call_operand.vmem [shape: f32[64,1], index: 5, kind: input, shape index: {}]
  %s6 = inlined_call_operand.vmem [shape: f32[32,4], index: 6, kind: input, shape index: {}]
  %s7 = inlined_call_operand.vmem [shape: f32[4,1], index: 7, kind: input, shape index: {}]
  %s8 = inlined_call_operand.hbm [shape: f32[2,4,128], index: 8, kind: output, shape index: {}]
  %s9 = sld [smem:[#allocation0]]
  $region69: #{tpu_custom_call.1} parent=0
    _
  %s11 = ssub.s32 1, %s9
  %s12 = scalar_select 0, %s11, %s9
  $region1: #{tpu_custom_call.1} parent=0
    #allocation3 [shape = 'u8[4096]{0}', space=vmem, size = 0x1000, scoped, tag = 'output window, operand 0']
    #allocation4 [shape = 's32[2]{0}', space=sflag, size = 0x8, scoped, tag = 'scoped memory for tpu_custom_call.1']
    %13 = vsyncpa [#allocation4], 0
    %s14 = scalar_lea.sflag [#allocation4], 1
    %15 = vsyncpa %s14, 0
    loop: start=0, step=1, limit=4
    $region2: #{tpu_custom_call.1} parent=1 // loop_pre_header
      _
    $region3: #{tpu_custom_call.1} parent=1 // loop_header
      %s17 = sphi 0, %s21
      %p18 = scmp.ge.s32.totalorder %s17, 4
      %s24 = sphi 0, %s43
      %s25 = sphi 0, %s39
      %s26 = sphi 0, %s35
      %s27 = sphi 0, %s24
      %s28 = sphi 0, %s25
      %s29 = sphi 0, %s26
      %s30 = sphi 0, %s27
      %s31 = sphi 0, %s28
      %s32 = sphi 0, %s29
      %s50 = sphi 0, %s52
      %s53 = sphi 0, %s50
      %s54 = sphi 0, %s53
      %s70 = sphi 0, %s54
      %s76 = sphi 0, %s78
      %s79 = sphi 0, %s76
      %s80 = sphi 0, %s79
      %s96 = sphi 0, %s80
      %s100 = sphi 0, %s100
      %s102 = sphi 0, %s100
      %s103 = sphi 0, %s102
      %s117 = sphi 0, %s103
      %s121 = sphi 0, %s121
      %s123 = sphi 0, %s121
      %s124 = sphi 0, %s123
      %s138 = sphi 0, %s124
      %s142 = sphi 0, %s142
      %s144 = sphi 0, %s142
      %s145 = sphi 0, %s144
      %s159 = sphi 0, %s145
      %s163 = sphi 0, %s163
      %s165 = sphi 0, %s163
      %s166 = sphi 0, %s165
      %s180 = sphi 0, %s166
      %s184 = sphi 0, %s184
      %s186 = sphi 0, %s184
      %s187 = sphi 0, %s186
      %s201 = sphi 0, %s187
      %s205 = sphi 0, %s205
      %s207 = sphi 0, %s205
      %s208 = sphi 0, %s207
      %s222 = sphi 0, %s208
      %s232 = sphi 0, %s234
      %s235 = sphi 0, %s232
      %s236 = sphi 0, %s235
      %s252 = sphi 0, %s236
    $region4: #{tpu_custom_call.1} parent=1 // loop_header_branch
      %20 = sbr.rel (%p18) target = $region8
    $region5: #{tpu_custom_call.1} parent=1 // loop_body
      %s22 = ssub.s32 %s17, 1
      %s23 = ssub.s32 %s17, 2
      %s33 = sadd.s32 1, %s26
      %p34 = scmp.ge.s32.totalorder %s33, 1
      %s35 = scalar_select %p34, 0, %s33
      %s36 = sadd.s32 1, %s25
      %s37 = scalar_select %p34, %s36, %s25
      %p38 = scmp.ge.s32.totalorder %s37, 1
      %s39 = scalar_select %p38, 0, %s37
      %s40 = sadd.s32 1, %s24
      %s41 = scalar_select %p38, %s40, %s24
      %p42 = scmp.ge.s32.totalorder %s41, 2
      %s43 = scalar_select %p42, 0, %s41
      %s44 = sadd.s32 %s25, %s26
      %s45 = sadd.s32 %s39, %s35
      %s46 = ssub.s32 %s24, %s43
      %s47 = ssub.s32 %s44, %s45
      %s48 = sor.u32 %s46, %s47
      %p49 = scmp.eq.s32.totalorder %s48, 0
      %s51 = sadd.s32 %s50, 1
      %s52 = scalar_select %p49, %s50, %s51
      %p55 = pneg %p49
      %p56 = scmp.eq.s32.totalorder %s17, 1
      %p57 = por %p55, %p56
      %p58 = scmp.ne.s32.totalorder %s50, %s53
      %p59 = scmp.eq.s32.totalorder %s17, 0
      %p60 = por %p58, %p59
      %p61 = scmp.ne.s32.totalorder %s50, %s53
      %p62 = scmp.eq.s32.totalorder %s22, 1
      %p63 = por %p61, %p62
      %p64 = scmp.ne.s32.totalorder %s53, %s54
      %p65 = scmp.eq.s32.totalorder %s22, 0
      %p66 = por %p64, %p65
      %p67 = scmp.ne.s32.totalorder %s53, %s54
      %p68 = scmp.eq.s32.totalorder %s23, 1
      %p69 = por %p67, %p68
      %p71 = scmp.ne.s32.totalorder %s54, %s70
      %p72 = scmp.eq.s32.totalorder %s23, 0
      %p73 = por %p71, %p72
      %s74 = ssub.s32 %s24, %s43
      %p75 = scmp.eq.s32.totalorder %s74, 0
      %s77 = sadd.s32 %s76, 1
      %s78 = scalar_select %p75, %s76, %s77
      %p81 = pneg %p75
      %p82 = scmp.eq.s32.totalorder %s17, 1
      %p83 = por %p81, %p82
      %p84 = scmp.ne.s32.totalorder %s76, %s79
      %p85 = scmp.eq.s32.totalorder %s17, 0
      %p86 = por %p84, %p85
      %p87 = scmp.ne.s32.totalorder %s76, %s79
      %p88 = scmp.eq.s32.totalorder %s22, 1
      %p89 = por %p87, %p88
      %p90 = scmp.ne.s32.totalorder %s79, %s80
      %p91 = scmp.eq.s32.totalorder %s22, 0
      %p92 = por %p90, %p91
      %p93 = scmp.ne.s32.totalorder %s79, %s80
      %p94 = scmp.eq.s32.totalorder %s23, 1
      %p95 = por %p93, %p94
      %p97 = scmp.ne.s32.totalorder %s80, %s96
      %p98 = scmp.eq.s32.totalorder %s23, 0
      %p99 = por %p97, %p98
      %s101 = sadd.s32 %s100, 1
      %p104 = scmp.eq.s32.totalorder %s17, 1
      %p105 = scmp.ne.s32.totalorder %s100, %s102
      %p106 = scmp.eq.s32.totalorder %s17, 0
      %p107 = por %p105, %p106
      %p108 = scmp.ne.s32.totalorder %s100, %s102
      %p109 = scmp.eq.s32.totalorder %s22, 1
      %p110 = por %p108, %p109
      %p111 = scmp.ne.s32.totalorder %s102, %s103
      %p112 = scmp.eq.s32.totalorder %s22, 0
      %p113 = por %p111, %p112
      %p114 = scmp.ne.s32.totalorder %s102, %s103
      %p115 = scmp.eq.s32.totalorder %s23, 1
      %p116 = por %p114, %p115
      %p118 = scmp.ne.s32.totalorder %s103, %s117
      %p119 = scmp.eq.s32.totalorder %s23, 0
      %p120 = por %p118, %p119
      %s122 = sadd.s32 %s121, 1
      %p125 = scmp.eq.s32.totalorder %s17, 1
      %p126 = scmp.ne.s32.totalorder %s121, %s123
      %p127 = scmp.eq.s32.totalorder %s17, 0
      %p128 = por %p126, %p127
      %p129 = scmp.ne.s32.totalorder %s121, %s123
      %p130 = scmp.eq.s32.totalorder %s22, 1
      %p131 = por %p129, %p130
      %p132 = scmp.ne.s32.totalorder %s123, %s124
      %p133 = scmp.eq.s32.totalorder %s22, 0
      %p134 = por %p132, %p133
      %p135 = scmp.ne.s32.totalorder %s123, %s124
      %p136 = scmp.eq.s32.totalorder %s23, 1
      %p137 = por %p135, %p136
      %p139 = scmp.ne.s32.totalorder %s124, %s138
      %p140 = scmp.eq.s32.totalorder %s23, 0
      %p141 = por %p139, %p140
      %s143 = sadd.s32 %s142, 1
      %p146 = scmp.eq.s32.totalorder %s17, 1
      %p147 = scmp.ne.s32.totalorder %s142, %s144
      %p148 = scmp.eq.s32.totalorder %s17, 0
      %p149 = por %p147, %p148
      %p150 = scmp.ne.s32.totalorder %s142, %s144
      %p151 = scmp.eq.s32.totalorder %s22, 1
      %p152 = por %p150, %p151
      %p153 = scmp.ne.s32.totalorder %s144, %s145
      %p154 = scmp.eq.s32.totalorder %s22, 0
      %p155 = por %p153, %p154
      %p156 = scmp.ne.s32.totalorder %s144, %s145
      %p157 = scmp.eq.s32.totalorder %s23, 1
      %p158 = por %p156, %p157
      %p160 = scmp.ne.s32.totalorder %s145, %s159
      %p161 = scmp.eq.s32.totalorder %s23, 0
      %p162 = por %p160, %p161
      %s164 = sadd.s32 %s163, 1
      %p167 = scmp.eq.s32.totalorder %s17, 1
      %p168 = scmp.ne.s32.totalorder %s163, %s165
      %p169 = scmp.eq.s32.totalorder %s17, 0
      %p170 = por %p168, %p169
      %p171 = scmp.ne.s32.totalorder %s163, %s165
      %p172 = scmp.eq.s32.totalorder %s22, 1
      %p173 = por %p171, %p172
      %p174 = scmp.ne.s32.totalorder %s165, %s166
      %p175 = scmp.eq.s32.totalorder %s22, 0
      %p176 = por %p174, %p175
      %p177 = scmp.ne.s32.totalorder %s165, %s166
      %p178 = scmp.eq.s32.totalorder %s23, 1
      %p179 = por %p177, %p178
      %p181 = scmp.ne.s32.totalorder %s166, %s180
      %p182 = scmp.eq.s32.totalorder %s23, 0
      %p183 = por %p181, %p182
      %s185 = sadd.s32 %s184, 1
      %p188 = scmp.eq.s32.totalorder %s17, 1
      %p189 = scmp.ne.s32.totalorder %s184, %s186
      %p190 = scmp.eq.s32.totalorder %s17, 0
      %p191 = por %p189, %p190
      %p192 = scmp.ne.s32.totalorder %s184, %s186
      %p193 = scmp.eq.s32.totalorder %s22, 1
      %p194 = por %p192, %p193
      %p195 = scmp.ne.s32.totalorder %s186, %s187
      %p196 = scmp.eq.s32.totalorder %s22, 0
      %p197 = por %p195, %p196
      %p198 = scmp.ne.s32.totalorder %s186, %s187
      %p199 = scmp.eq.s32.totalorder %s23, 1
      %p200 = por %p198, %p199
      %p202 = scmp.ne.s32.totalorder %s187, %s201
      %p203 = scmp.eq.s32.totalorder %s23, 0
      %p204 = por %p202, %p203
      %s206 = sadd.s32 %s205, 1
      %p209 = scmp.eq.s32.totalorder %s17, 1
      %p210 = scmp.ne.s32.totalorder %s205, %s207
      %p211 = scmp.eq.s32.totalorder %s17, 0
      %p212 = por %p210, %p211
      %p213 = scmp.ne.s32.totalorder %s205, %s207
      %p214 = scmp.eq.s32.totalorder %s22, 1
      %p215 = por %p213, %p214
      %p216 = scmp.ne.s32.totalorder %s207, %s208
      %p217 = scmp.eq.s32.totalorder %s22, 0
      %p218 = por %p216, %p217
      %p219 = scmp.ne.s32.totalorder %s207, %s208
      %p220 = scmp.eq.s32.totalorder %s23, 1
      %p221 = por %p219, %p220
      %p223 = scmp.ne.s32.totalorder %s208, %s222
      %p224 = scmp.eq.s32.totalorder %s23, 0
      %p225 = por %p223, %p224
      %s226 = sadd.s32 %s25, %s26
      %s227 = sadd.s32 %s39, %s35
      %s228 = ssub.s32 %s24, %s43
      %s229 = ssub.s32 %s226, %s227
      %s230 = sor.u32 %s228, %s229
      %p231 = scmp.eq.s32.totalorder %s230, 0
      %s233 = sadd.s32 %s232, 1
      %s234 = scalar_select %p231, %s232, %s233
      %p237 = pneg %p231
      %p238 = scmp.eq.s32.totalorder %s17, 1
      %p239 = por %p237, %p238
      %p240 = scmp.ne.s32.totalorder %s232, %s235
      %p241 = scmp.eq.s32.totalorder %s17, 0
      %p242 = por %p240, %p241
      %p243 = scmp.ne.s32.totalorder %s232, %s235
      %p244 = scmp.eq.s32.totalorder %s22, 1
      %p245 = por %p243, %p244
      %p246 = scmp.ne.s32.totalorder %s235, %s236
      %p247 = scmp.eq.s32.totalorder %s22, 0
      %p248 = por %p246, %p247
      %p249 = scmp.ne.s32.totalorder %s235, %s236
      %p250 = scmp.eq.s32.totalorder %s23, 1
      %p251 = por %p249, %p250
      %p253 = scmp.ne.s32.totalorder %s236, %s252
      %p254 = scmp.eq.s32.totalorder %s23, 0
      %p255 = por %p253, %p254
      %p256 = scmp.le.s32.totalorder 1, %s17
      %p257 = scmp.lt.s32.totalorder %s17, 3
      %p258 = pnand %p256, %p257
      %p259 = pneg %p258
      // Predicated region
      $region9: #{tpu_custom_call.1} parent=5 // pred_check
        _
      $region10: #{tpu_custom_call.1} parent=5 // pred_check_branch
        %261 = sbr.rel (%p258) target = $region12
      $region11: #{tpu_custom_call.1} parent=5 // pred_region
        %s262 = ssub.s32 %s17, 1
        // Predicated region
        $region13: #{tpu_custom_call.1} parent=11 // pred_check
          %p263 = pneg %p113
        $region14: #{tpu_custom_call.1} parent=11 // pred_check_branch
          %265 = sbr.rel (%p263) target = $region16
        $region15: #{tpu_custom_call.1} parent=11 // pred_region
          _
        $region16: #{tpu_custom_call.1} parent=11 // pred_fallthru
          _
        // Predicated region
        $region17: #{tpu_custom_call.1} parent=11 // pred_check
          %p266 = pneg %p134
        $region18: #{tpu_custom_call.1} parent=11 // pred_check_branch
          %268 = sbr.rel (%p266) target = $region20
        $region19: #{tpu_custom_call.1} parent=11 // pred_region
          _
        $region20: #{tpu_custom_call.1} parent=11 // pred_fallthru
          _
        // Predicated region
        $region21: #{tpu_custom_call.1} parent=11 // pred_check
          %p269 = pneg %p155
        $region22: #{tpu_custom_call.1} parent=11 // pred_check_branch
          %271 = sbr.rel (%p269) target = $region24
        $region23: #{tpu_custom_call.1} parent=11 // pred_region
          _
        $region24: #{tpu_custom_call.1} parent=11 // pred_fallthru
          _
        // Predicated region
        $region25: #{tpu_custom_call.1} parent=11 // pred_check
          %p272 = pneg %p176
        $region26: #{tpu_custom_call.1} parent=11 // pred_check_branch
          %274 = sbr.rel (%p272) target = $region28
        $region27: #{tpu_custom_call.1} parent=11 // pred_region
          _
        $region28: #{tpu_custom_call.1} parent=11 // pred_fallthru
          _
        // Predicated region
        $region29: #{tpu_custom_call.1} parent=11 // pred_check
          %p275 = pneg %p197
        $region30: #{tpu_custom_call.1} parent=11 // pred_check_branch
          %277 = sbr.rel (%p275) target = $region32
        $region31: #{tpu_custom_call.1} parent=11 // pred_region
          _
        $region32: #{tpu_custom_call.1} parent=11 // pred_fallthru
          _
        // Predicated region
        $region33: #{tpu_custom_call.1} parent=11 // pred_check
          %p278 = pneg %p218
        $region34: #{tpu_custom_call.1} parent=11 // pred_check_branch
          %280 = sbr.rel (%p278) target = $region36
        $region35: #{tpu_custom_call.1} parent=11 // pred_region
          _
        $region36: #{tpu_custom_call.1} parent=11 // pred_fallthru
          _
      $region12: #{tpu_custom_call.1} parent=5 // pred_fallthru
        _
      %p281 = scmp.lt.s32.totalorder %s17, 2
      // Predicated region
      $region37: #{tpu_custom_call.1} parent=5 // pred_check
        %p282 = pneg %p281
      $region38: #{tpu_custom_call.1} parent=5 // pred_check_branch
        %284 = sbr.rel (%p282) target = $region40
      $region39: #{tpu_custom_call.1} parent=5 // pred_region
        // Predicated region
        $region41: #{tpu_custom_call.1} parent=39 // pred_check
          %p285 = pneg %p60
        $region42: #{tpu_custom_call.1} parent=39 // pred_check_branch
          %287 = sbr.rel (%p285) target = $region44
        $region43: #{tpu_custom_call.1} parent=39 // pred_region
          %s288 = sadd.s32 %s25, %s26
          %p289 = scmp.lt.s32.totalorder %s24, 1
          %s290 = scalar_select %p289, %s24, 1
          %p291 = scmp.lt.s32.totalorder %s288, 0
          %s292 = scalar_select %p291, %s288, 0
          %s293 = sadd.s32 %s292, %s290
          %s294 = smul.addr %s293, 4
          %s295 = scalar_lea.vmem %s0, %s294
          %s296 = sadd.s32 %s25, %s26
        $region44: #{tpu_custom_call.1} parent=39 // pred_fallthru
          _
        // Predicated region
        $region45: #{tpu_custom_call.1} parent=39 // pred_check
          %p297 = pneg %p86
        $region46: #{tpu_custom_call.1} parent=39 // pred_check_branch
          %299 = sbr.rel (%p297) target = $region48
        $region47: #{tpu_custom_call.1} parent=39 // pred_region
          %p300 = scmp.lt.s32.totalorder %s24, 1
          %s301 = scalar_select %p300, %s24, 1
          %s302 = smul.addr %s301, 4
          %s303 = scalar_lea.vmem %s1, %s302
        $region48: #{tpu_custom_call.1} parent=39 // pred_fallthru
          _
      $region40: #{tpu_custom_call.1} parent=5 // pred_fallthru
        _
      %p304 = scmp.le.s32.totalorder 1, %s17
      %p305 = scmp.lt.s32.totalorder %s17, 3
      %p306 = pnand %p304, %p305
      %p307 = pneg %p306
      // Predicated region
      $region49: #{tpu_custom_call.1} parent=5 // pred_check
        _
      $region50: #{tpu_custom_call.1} parent=5 // pred_check_branch
        %309 = sbr.rel (%p306) target = $region52
      $region51: #{tpu_custom_call.1} parent=5 // pred_region
        %s310 = ssub.s32 %s17, 1
        %s311 = sadd.s32 %s28, %s29
        %p312 = scmp.lt.s32.totalorder %s27, 1
        %s313 = scalar_select %p312, %s27, 1
        %p314 = scmp.lt.s32.totalorder %s311, 0
        %s315 = scalar_select %p314, %s311, 0
        %s316 = sadd.s32 %s315, %s313
        %s317 = smul.addr %s316, 4
        %s318 = scalar_lea.vmem %s0, %s317
        %p319 = pneg %p66
        %p320 = pneg %p63
        %p321 = scmp.lt.s32.totalorder %s27, 1
        %s322 = scalar_select %p321, %s27, 1
        %s323 = smul.addr %s322, 4
        %s324 = scalar_lea.vmem %s1, %s323
        %p325 = pneg %p92
        %p326 = pneg %p89
        %p327 = pneg %p113
        %p328 = pneg %p110
        %p329 = pneg %p134
        %p330 = pneg %p131
        %p331 = pneg %p155
        %p332 = pneg %p152
        %p333 = pneg %p176
        %p334 = pneg %p173
        %p335 = pneg %p197
        %p336 = pneg %p194
        %p337 = pneg %p218
        %p338 = pneg %p215
        %p339 = pneg %p248
        %p340 = pneg %p245
        %s341 = sand.u32 %s235, 1
        %s342 = scalar_lea.sflag [#allocation4], %s341
        %s343 = sand.u32 %s235, 1
        %s344 = smul.addr %s343, 4
        %s345 = scalar_lea.vmem [#allocation3], %s344
        %s346 = sadd.s32 %s28, %s29
        %p347 = scmp.lt.s32.totalorder %s27, 1
        %s348 = scalar_select %p347, %s27, 1
        %p349 = scmp.lt.s32.totalorder %s346, 0
        %s350 = scalar_select %p349, %s346, 0
        %s351 = sadd.s32 %s350, %s348
        %s352 = smul.addr %s351, 4
        %s353 = scalar_lea.vmem %s0, %s352
        %s354 = sadd.s32 %s28, %s29
        %p355 = scmp.lt.s32.totalorder %s27, 1
        %s356 = scalar_select %p355, %s27, 1
        %s357 = smul.addr %s356, 4
        %s358 = scalar_lea.vmem %s1, %s357
        %s359 = sadd.s32 %s28, %s29
        %p360 = scmp.eq.s32.totalorder %s29, 0
        // Predicated region
        $region53: #{tpu_custom_call.1} parent=51 // pred_check
          %p361 = pneg %p360
        $region54: #{tpu_custom_call.1} parent=51 // pred_check_branch
          %363 = sbr.rel (%p361) target = $region56
        $region55: #{tpu_custom_call.1} parent=51 // pred_region
          %v364 = vld [vmem:[%s358] sm:$0xf]
          %v365 = vld [vmem:[%s4] sm:$0xf]
          %v366 = vld [vmem:[%s5] sm:$0xff]
          %v367 = vld [vmem:[%s5 + $0x8] sm:$0xff]
          %v368 = vld [vmem:[%s5 + $0x10] sm:$0xff]
          %v369 = vld [vmem:[%s5 + $0x18] sm:$0xff]
          %v370 = vld [vmem:[%s5 + $0x20] sm:$0xff]
          %v371 = vld [vmem:[%s5 + $0x28] sm:$0xff]
          %v372 = vld [vmem:[%s5 + $0x30] sm:$0xff]
          %v373 = vld [vmem:[%s5 + $0x38] sm:$0xff]
          %375 = vset.pattern.permute.xlu0 0
          %376 = vperm.xlu0 %375, %v366
          %v377 = vpop.permute.xlu0 %376
          %380 = vset.pattern.permute.xlu0 0
          %381 = vperm.xlu0 %380, %v367
          %v382 = vpop.permute.xlu0 %381
          %385 = vset.pattern.permute.xlu0 0
          %386 = vperm.xlu0 %385, %v368
          %v387 = vpop.permute.xlu0 %386
          %390 = vset.pattern.permute.xlu0 0
          %391 = vperm.xlu0 %390, %v369
          %v392 = vpop.permute.xlu0 %391
          %395 = vset.pattern.permute.xlu0 0
          %396 = vperm.xlu0 %395, %v370
          %v397 = vpop.permute.xlu0 %396
          %400 = vset.pattern.permute.xlu0 0
          %401 = vperm.xlu0 %400, %v371
          %v402 = vpop.permute.xlu0 %401
          %405 = vset.pattern.permute.xlu0 0
          %406 = vperm.xlu0 %405, %v372
          %v407 = vpop.permute.xlu0 %406
          %410 = vset.pattern.permute.xlu0 0
          %411 = vperm.xlu0 %410, %v373
          %v412 = vpop.permute.xlu0 %411
          %414 = vxpose.xlu0.b32.start [1/16] %v365, 128
          %415 = vxpose.xlu0.b32.cont [2/16] 0.0, 128
          %416 = vxpose.xlu0.b32.cont [3/16] 0.0, 128
          %417 = vxpose.xlu0.b32.cont [4/16] 0.0, 128
          %418 = vxpose.xlu0.b32.cont [5/16] 0.0, 128
          %419 = vxpose.xlu0.b32.cont [6/16] 0.0, 128
          %420 = vxpose.xlu0.b32.cont [7/16] 0.0, 128
          %421 = vxpose.xlu0.b32.cont [8/16] 0.0, 128
          %422 = vxpose.xlu0.b32.cont [9/16] 0.0, 128
          %423 = vxpose.xlu0.b32.cont [10/16] 0.0, 128
          %424 = vxpose.xlu0.b32.cont [11/16] 0.0, 128
          %425 = vxpose.xlu0.b32.cont [12/16] 0.0, 128
          %426 = vxpose.xlu0.b32.cont [13/16] 0.0, 128
          %427 = vxpose.xlu0.b32.cont [14/16] 0.0, 128
          %428 = vxpose.xlu0.b32.cont [15/16] 0.0, 128
          %429 = vxpose.xlu0.b32.end [16/16] 0.0, 128
          %v430 = vpop.trf.xlu0
          %v431 = vpop.trf.xlu0
          %v432 = vpop.trf.xlu0
          %v433 = vpop.trf.xlu0
          %v434 = vpop.trf.xlu0
          %v435 = vpop.trf.xlu0
          %v436 = vpop.trf.xlu0
          %v437 = vpop.trf.xlu0
          %v438 = vpop.trf.xlu0
          %v439 = vpop.trf.xlu0
          %v440 = vpop.trf.xlu0
          %v441 = vpop.trf.xlu0
          %v442 = vpop.trf.xlu0
          %v443 = vpop.trf.xlu0
          %v444 = vpop.trf.xlu0
          %v445 = vpop.trf.xlu0
          %vm446 = vcmask 31744
          %v448 = vsel %vm446, %v430, 0
          %v451 = vsel %vm446, %v431, 0
          %v454 = vsel %vm446, %v432, 0
          %v457 = vsel %vm446, %v433, 0
          %v460 = vsel %vm446, %v434, 0
          %v463 = vsel %vm446, %v435, 0
          %v466 = vsel %vm446, %v436, 0
          %v469 = vsel %vm446, %v437, 0
          %vm471 = vcmask 1043456
          %v473 = vsel %vm471, %v364, 0
          %475 = vmatprep.subr.mxu0 0.0
          %476 = vmatpush1.msra.mxu0 %v473
          %477 = vmatprep.subr.mxu0 0.0
          %478 = vmatpush1.msra.mxu0 0.0
          %479 = vmatprep.subr.mxu0 0.0
          %480 = vmatpush1.msra.mxu0 0.0
          %481 = vmatprep.subr.mxu0 0.0
          %482 = vmatpush1.msra.mxu0 0.0
          %483 = vmatprep.subr.mxu0 0.0
          %484 = vmatpush1.msra.mxu0 0.0
          %485 = vmatprep.subr.mxu0 0.0
          %486 = vmatpush1.msra.mxu0 0.0
          %487 = vmatprep.subr.mxu0 0.0
          %488 = vmatpush1.msra.mxu0 0.0
          %489 = vmatprep.subr.mxu0 0.0
          %490 = vmatpush1.msra.mxu0 0.0
          %491 = vmatprep.subr.mxu0 0.0
          %492 = vmatpush1.msra.mxu0 0.0
          %493 = vmatprep.subr.mxu0 0.0
          %494 = vmatpush1.msra.mxu0 0.0
          %495 = vmatprep.subr.mxu0 0.0
          %496 = vmatpush1.msra.mxu0 0.0
          %497 = vmatprep.subr.mxu0 0.0
          %498 = vmatpush1.msra.mxu0 0.0
          %499 = vmatprep.subr.mxu0 0.0
          %500 = vmatpush1.msra.mxu0 0.0
          %501 = vmatprep.subr.mxu0 0.0
          %502 = vmatpush1.msra.mxu0 0.0
          %503 = vmatprep.subr.mxu0 0.0
          %504 = vmatpush1.msra.mxu0 0.0
          %505 = vmatprep.subr.mxu0 0.0
          %506 = vmatpush1.msra.mxu0 0.0
          %507 = vmatprep.subr.mxu0 0.0
          %508 = vmatpush1.msra.mxu0 0.0
          %509 = vmatprep.subr.mxu0 0.0
          %510 = vmatpush1.msra.mxu0 0.0
          %511 = vmatprep.subr.mxu0 0.0
          %512 = vmatpush1.msra.mxu0 0.0
          %513 = vmatprep.subr.mxu0 0.0
          %514 = vmatpush1.msra.mxu0 0.0
          %515 = vmatprep.subr.mxu0 0.0
          %516 = vmatpush1.msra.mxu0 0.0
          %517 = vmatprep.subr.mxu0 0.0
          %518 = vmatpush1.msra.mxu0 0.0
          %519 = vmatprep.subr.mxu0 0.0
          %520 = vmatpush1.msra.mxu0 0.0
          %521 = vmatprep.subr.mxu0 0.0
          %522 = vmatpush1.msra.mxu0 0.0
          %523 = vmatprep.subr.mxu0 0.0
          %524 = vmatpush1.msra.mxu0 0.0
          %525 = vmatprep.subr.mxu0 0.0
          %526 = vmatpush1.msra.mxu0 0.0
          %527 = vmatprep.subr.mxu0 0.0
          %528 = vmatpush1.msra.mxu0 0.0
          %529 = vmatprep.subr.mxu0 0.0
          %530 = vmatpush1.msra.mxu0 0.0
          %531 = vmatprep.subr.mxu0 0.0
          %532 = vmatpush1.msra.mxu0 0.0
          %533 = vmatprep.subr.mxu0 0.0
          %534 = vmatpush1.msra.mxu0 0.0
          %535 = vmatprep.subr.mxu0 0.0
          %536 = vmatpush1.msra.mxu0 0.0
          %537 = vmatprep.subr.mxu0 0.0
          %538 = vmatpush1.msra.mxu0 0.0
          %539 = vmatprep.mubr.f32.mxu0 0.0
          %540 = vmatmul.mubr.f32.gmra.mrb[0].mxu0 %v448
          %v541 = vpop.f32.mrb[0].mxu0
          %v542 = vadd.f32 %v377, %v541
          %v543 = vpop.f32.mrb[0].mxu0
          %544 = vmatprep.mubr.f32.mxu0 0.0
          %545 = vmatmul.mubr.f32.gmra.mrb[0].mxu0 %v451
          %v546 = vpop.f32.mrb[0].mxu0
          %v547 = vadd.f32 %v382, %v546
          %v548 = vpop.f32.mrb[0].mxu0
          %549 = vmatprep.mubr.f32.mxu0 0.0
          %550 = vmatmul.mubr.f32.gmra.mrb[0].mxu0 %v454
          %v551 = vpop.f32.mrb[0].mxu0
          %v552 = vadd.f32 %v387, %v551
          %v553 = vpop.f32.mrb[0].mxu0
          %554 = vmatprep.mubr.f32.mxu0 0.0
          %555 = vmatmul.mubr.f32.gmra.mrb[0].mxu0 %v457
          %v556 = vpop.f32.mrb[0].mxu0
          %v557 = vadd.f32 %v392, %v556
          %v558 = vpop.f32.mrb[0].mxu0
          %559 = vmatprep.mubr.f32.mxu0 0.0
          %560 = vmatmul.mubr.f32.gmra.mrb[0].mxu0 %v460
          %v561 = vpop.f32.mrb[0].mxu0
          %v562 = vadd.f32 %v397, %v561
          %v563 = vpop.f32.mrb[0].mxu0
          %564 = vmatprep.mubr.f32.mxu0 0.0
          %565 = vmatmul.mubr.f32.gmra.mrb[0].mxu0 %v463
          %v566 = vpop.f32.mrb[0].mxu0
          %v567 = vadd.f32 %v402, %v566
          %v568 = vpop.f32.mrb[0].mxu0
          %569 = vmatprep.mubr.f32.mxu0 0.0
          %570 = vmatmul.mubr.f32.gmra.mrb[0].mxu0 %v466
          %v571 = vpop.f32.mrb[0].mxu0
          %v572 = vadd.f32 %v407, %v571
          %v573 = vpop.f32.mrb[0].mxu0
          %574 = vmatprep.mubr.f32.mxu0 0.0
          %575 = vmatmul.mubr.f32.gmra.mrb[0].mxu0 %v469
          %v576 = vpop.f32.mrb[0].mxu0
          %v577 = vadd.f32 %v412, %v576
          %v578 = vpop.f32.mrb[0].mxu0
          %579 = vdwg.mxu0
          %580 = vst [vmem:[#allocation2] sm:$0xff] %v542
          %581 = vst [vmem:[#allocation2 + $0x8] sm:$0xff] %v547
          %582 = vst [vmem:[#allocation2 + $0x10] sm:$0xff] %v552
          %583 = vst [vmem:[#allocation2 + $0x18] sm:$0xff] %v557
          %584 = vst [vmem:[#allocation2 + $0x20] sm:$0xff] %v562
          %585 = vst [vmem:[#allocation2 + $0x28] sm:$0xff] %v567
          %586 = vst [vmem:[#allocation2 + $0x30] sm:$0xff] %v572
          %587 = vst [vmem:[#allocation2 + $0x38] sm:$0xff] %v577
        $region56: #{tpu_custom_call.1} parent=51 // pred_fallthru
          _
        %v588 = vld [vmem:[%s353] sm:$0xf]
        %v589 = vld [vmem:[%s2] sm:$0xf]
        %v590 = vld [vmem:[%s3] sm:$0xff]
        %v591 = vld [vmem:[%s3 + $0x8] sm:$0xff]
        %v592 = vld [vmem:[%s3 + $0x10] sm:$0xff]
        %v593 = vld [vmem:[%s3 + $0x18] sm:$0xff]
        %595 = vset.pattern.permute.xlu0 0
        %596 = vperm.xlu0 %595, %v590
        %v597 = vpop.permute.xlu0 %596
        %600 = vset.pattern.permute.xlu0 0
        %601 = vperm.xlu0 %600, %v591
        %v602 = vpop.permute.xlu0 %601
        %605 = vset.pattern.permute.xlu0 0
        %606 = vperm.xlu0 %605, %v592
        %v607 = vpop.permute.xlu0 %606
        %610 = vset.pattern.permute.xlu0 0
        %611 = vperm.xlu0 %610, %v593
        %v612 = vpop.permute.xlu0 %611
        %614 = vxpose.xlu0.b32.start [1/16] %v589, 128
        %615 = vxpose.xlu0.b32.cont [2/16] 0.0, 128
        %616 = vxpose.xlu0.b32.cont [3/16] 0.0, 128
        %617 = vxpose.xlu0.b32.cont [4/16] 0.0, 128
        %618 = vxpose.xlu0.b32.cont [5/16] 0.0, 128
        %619 = vxpose.xlu0.b32.cont [6/16] 0.0, 128
        %620 = vxpose.xlu0.b32.cont [7/16] 0.0, 128
        %621 = vxpose.xlu0.b32.cont [8/16] 0.0, 128
        %622 = vxpose.xlu0.b32.cont [9/16] 0.0, 128
        %623 = vxpose.xlu0.b32.cont [10/16] 0.0, 128
        %624 = vxpose.xlu0.b32.cont [11/16] 0.0, 128
        %625 = vxpose.xlu0.b32.cont [12/16] 0.0, 128
        %626 = vxpose.xlu0.b32.cont [13/16] 0.0, 128
        %627 = vxpose.xlu0.b32.cont [14/16] 0.0, 128
        %628 = vxpose.xlu0.b32.cont [15/16] 0.0, 128
        %629 = vxpose.xlu0.b32.end [16/16] 0.0, 128
        %v630 = vpop.trf.xlu0
        %v631 = vpop.trf.xlu0
        %v632 = vpop.trf.xlu0
        %v633 = vpop.trf.xlu0
        %v634 = vpop.trf.xlu0
        %v635 = vpop.trf.xlu0
        %v636 = vpop.trf.xlu0
        %v637 = vpop.trf.xlu0
        %v638 = vpop.trf.xlu0
        %v639 = vpop.trf.xlu0
        %v640 = vpop.trf.xlu0
        %v641 = vpop.trf.xlu0
        %v642 = vpop.trf.xlu0
        %v643 = vpop.trf.xlu0
        %v644 = vpop.trf.xlu0
        %v645 = vpop.trf.xlu0
        %vm646 = vcmask 31744
        %v648 = vsel %vm646, %v630, 0
        %v651 = vsel %vm646, %v631, 0
        %v654 = vsel %vm646, %v632, 0
        %v657 = vsel %vm646, %v633, 0
        %vm659 = vcmask 1043456
        %v661 = vsel %vm659, %v588, 0
        %663 = vmatprep.subr.mxu0 0.0
        %664 = vmatpush1.msra.mxu0 %v661
        %665 = vmatprep.subr.mxu0 0.0
        %666 = vmatpush1.msra.mxu0 0.0
        %667 = vmatprep.subr.mxu0 0.0
        %668 = vmatpush1.msra.mxu0 0.0
        %669 = vmatprep.subr.mxu0 0.0
        %670 = vmatpush1.msra.mxu0 0.0
        %671 = vmatprep.subr.mxu0 0.0
        %672 = vmatpush1.msra.mxu0 0.0
        %673 = vmatprep.subr.mxu0 0.0
        %674 = vmatpush1.msra.mxu0 0.0
        %675 = vmatprep.subr.mxu0 0.0
        %676 = vmatpush1.msra.mxu0 0.0
        %677 = vmatprep.subr.mxu0 0.0
        %678 = vmatpush1.msra.mxu0 0.0
        %679 = vmatprep.subr.mxu0 0.0
        %680 = vmatpush1.msra.mxu0 0.0
        %681 = vmatprep.subr.mxu0 0.0
        %682 = vmatpush1.msra.mxu0 0.0
        %683 = vmatprep.subr.mxu0 0.0
        %684 = vmatpush1.msra.mxu0 0.0
        %685 = vmatprep.subr.mxu0 0.0
        %686 = vmatpush1.msra.mxu0 0.0
        %687 = vmatprep.subr.mxu0 0.0
        %688 = vmatpush1.msra.mxu0 0.0
        %689 = vmatprep.subr.mxu0 0.0
        %690 = vmatpush1.msra.mxu0 0.0
        %691 = vmatprep.subr.mxu0 0.0
        %692 = vmatpush1.msra.mxu0 0.0
        %693 = vmatprep.subr.mxu0 0.0
        %694 = vmatpush1.msra.mxu0 0.0
        %695 = vmatprep.subr.mxu0 0.0
        %696 = vmatpush1.msra.mxu0 0.0
        %697 = vmatprep.subr.mxu0 0.0
        %698 = vmatpush1.msra.mxu0 0.0
        %699 = vmatprep.subr.mxu0 0.0
        %700 = vmatpush1.msra.mxu0 0.0
        %701 = vmatprep.subr.mxu0 0.0
        %702 = vmatpush1.msra.mxu0 0.0
        %703 = vmatprep.subr.mxu0 0.0
        %704 = vmatpush1.msra.mxu0 0.0
        %705 = vmatprep.subr.mxu0 0.0
        %706 = vmatpush1.msra.mxu0 0.0
        %707 = vmatprep.subr.mxu0 0.0
        %708 = vmatpush1.msra.mxu0 0.0
        %709 = vmatprep.subr.mxu0 0.0
        %710 = vmatpush1.msra.mxu0 0.0
        %711 = vmatprep.subr.mxu0 0.0
        %712 = vmatpush1.msra.mxu0 0.0
        %713 = vmatprep.subr.mxu0 0.0
        %714 = vmatpush1.msra.mxu0 0.0
        %715 = vmatprep.subr.mxu0 0.0
        %716 = vmatpush1.msra.mxu0 0.0
        %717 = vmatprep.subr.mxu0 0.0
        %718 = vmatpush1.msra.mxu0 0.0
        %719 = vmatprep.subr.mxu0 0.0
        %720 = vmatpush1.msra.mxu0 0.0
        %721 = vmatprep.subr.mxu0 0.0
        %722 = vmatpush1.msra.mxu0 0.0
        %723 = vmatprep.subr.mxu0 0.0
        %724 = vmatpush1.msra.mxu0 0.0
        %725 = vmatprep.subr.mxu0 0.0
        %726 = vmatpush1.msra.mxu0 0.0
        %727 = vmatprep.mubr.f32.mxu0 0.0
        %728 = vmatmul.mubr.f32.gmra.mrb[0].mxu0 %v648
        %v729 = vpop.f32.mrb[0].mxu0
        %v730 = vadd.f32 %v597, %v729
        %v731 = vpop.f32.mrb[0].mxu0
        %732 = vmatprep.mubr.f32.mxu0 0.0
        %733 = vmatmul.mubr.f32.gmra.mrb[0].mxu0 %v651
        %v734 = vpop.f32.mrb[0].mxu0
        %v735 = vadd.f32 %v602, %v734
        %v736 = vpop.f32.mrb[0].mxu0
        %737 = vmatprep.mubr.f32.mxu0 0.0
        %738 = vmatmul.mubr.f32.gmra.mrb[0].mxu0 %v654
        %v739 = vpop.f32.mrb[0].mxu0
        %v740 = vadd.f32 %v607, %v739
        %v741 = vpop.f32.mrb[0].mxu0
        %742 = vmatprep.mubr.f32.mxu0 0.0
        %743 = vmatmul.mubr.f32.gmra.mrb[0].mxu0 %v657
        %v744 = vpop.f32.mrb[0].mxu0
        %v745 = vadd.f32 %v612, %v744
        %v746 = vpop.f32.mrb[0].mxu0
        %747 = vdwg.mxu0
        %v748 = vld [vmem:[#allocation2] sm:$0xff]
        %v749 = vld [vmem:[#allocation2 + $0x8] sm:$0xff]
        %v750 = vld [vmem:[#allocation2 + $0x10] sm:$0xff]
        %v751 = vld [vmem:[#allocation2 + $0x18] sm:$0xff]
        %v752 = vld [vmem:[#allocation2 + $0x20] sm:$0xff]
        %v753 = vld [vmem:[#allocation2 + $0x28] sm:$0xff]
        %v754 = vld [vmem:[#allocation2 + $0x30] sm:$0xff]
        %v755 = vld [vmem:[#allocation2 + $0x38] sm:$0xff]
        %756 = vxpose.xlu0.b32.start [1/16] %v730, 128
        %757 = vxpose.xlu0.b32.cont [2/16] %v735, 128
        %758 = vxpose.xlu0.b32.cont [3/16] %v740, 128
        %759 = vxpose.xlu0.b32.cont [4/16] %v745, 128
        %760 = vxpose.xlu0.b32.cont [5/16] 0.0, 128
        %761 = vxpose.xlu0.b32.cont [6/16] 0.0, 128
        %762 = vxpose.xlu0.b32.cont [7/16] 0.0, 128
        %763 = vxpose.xlu0.b32.cont [8/16] 0.0, 128
        %764 = vxpose.xlu0.b32.cont [9/16] 0.0, 128
        %765 = vxpose.xlu0.b32.cont [10/16] 0.0, 128
        %766 = vxpose.xlu0.b32.cont [11/16] 0.0, 128
        %767 = vxpose.xlu0.b32.cont [12/16] 0.0, 128
        %768 = vxpose.xlu0.b32.cont [13/16] 0.0, 128
        %769 = vxpose.xlu0.b32.cont [14/16] 0.0, 128
        %770 = vxpose.xlu0.b32.cont [15/16] 0.0, 128
        %771 = vxpose.xlu0.b32.end [16/16] 0.0, 128
        %v772 = vpop.trf.xlu0
        %v773 = vpop.trf.xlu0
        %v774 = vpop.trf.xlu0
        %v775 = vpop.trf.xlu0
        %v776 = vpop.trf.xlu0
        %v777 = vpop.trf.xlu0
        %v778 = vpop.trf.xlu0
        %v779 = vpop.trf.xlu0
        %v780 = vpop.trf.xlu0
        %v781 = vpop.trf.xlu0
        %v782 = vpop.trf.xlu0
        %v783 = vpop.trf.xlu0
        %v784 = vpop.trf.xlu0
        %v785 = vpop.trf.xlu0
        %v786 = vpop.trf.xlu0
        %v787 = vpop.trf.xlu0
        %vm788 = vcmask 261120
        %v790 = vsel %vm788, %v772, 0
        %v793 = vsel %vm788, %v773, 0
        %v796 = vsel %vm788, %v774, 0
        %v799 = vsel %vm788, %v775, 0
        %v802 = vsel %vm788, %v776, 0
        %v805 = vsel %vm788, %v777, 0
        %v808 = vsel %vm788, %v778, 0
        %v811 = vsel %vm788, %v779, 0
        %v814 = vsel %vm788, %v780, 0
        %v817 = vsel %vm788, %v781, 0
        %v820 = vsel %vm788, %v782, 0
        %v823 = vsel %vm788, %v783, 0
        %v826 = vsel %vm788, %v784, 0
        %v829 = vsel %vm788, %v785, 0
        %v832 = vsel %vm788, %v786, 0
        %v835 = vsel %vm788, %v787, 0
        %837 = vmatprep.subr.mxu0 0.0
        %838 = vmatpush1.msra.mxu0 %v748
        %839 = vmatprep.subr.mxu0 0.0
        %840 = vmatpush1.msra.mxu0 %v749
        %841 = vmatprep.subr.mxu0 0.0
        %842 = vmatpush1.msra.mxu0 %v750
        %843 = vmatprep.subr.mxu0 0.0
        %844 = vmatpush1.msra.mxu0 %v751
        %845 = vmatprep.subr.mxu0 0.0
        %846 = vmatpush1.msra.mxu0 0.0
        %847 = vmatprep.subr.mxu0 0.0
        %848 = vmatpush1.msra.mxu0 0.0
        %849 = vmatprep.subr.mxu0 0.0
        %850 = vmatpush1.msra.mxu0 0.0
        %851 = vmatprep.subr.mxu0 0.0
        %852 = vmatpush1.msra.mxu0 0.0
        %853 = vmatprep.subr.mxu0 0.0
        %854 = vmatpush1.msra.mxu0 0.0
        %855 = vmatprep.subr.mxu0 0.0
        %856 = vmatpush1.msra.mxu0 0.0
        %857 = vmatprep.subr.mxu0 0.0
        %858 = vmatpush1.msra.mxu0 0.0
        %859 = vmatprep.subr.mxu0 0.0
        %860 = vmatpush1.msra.mxu0 0.0
        %861 = vmatprep.subr.mxu0 0.0
        %862 = vmatpush1.msra.mxu0 0.0
        %863 = vmatprep.subr.mxu0 0.0
        %864 = vmatpush1.msra.mxu0 0.0
        %865 = vmatprep.subr.mxu0 0.0
        %866 = vmatpush1.msra.mxu0 0.0
        %867 = vmatprep.subr.mxu0 0.0
        %868 = vmatpush1.msra.mxu0 0.0
        %869 = vmatprep.subr.mxu0 0.0
        %870 = vmatpush1.msra.mxu0 0.0
        %871 = vmatprep.subr.mxu0 0.0
        %872 = vmatpush1.msra.mxu0 0.0
        %873 = vmatprep.subr.mxu0 0.0
        %874 = vmatpush1.msra.mxu0 0.0
        %875 = vmatprep.subr.mxu0 0.0
        %876 = vmatpush1.msra.mxu0 0.0
        %877 = vmatprep.subr.mxu0 0.0
        %878 = vmatpush1.msra.mxu0 0.0
        %879 = vmatprep.subr.mxu0 0.0
        %880 = vmatpush1.msra.mxu0 0.0
        %881 = vmatprep.subr.mxu0 0.0
        %882 = vmatpush1.msra.mxu0 0.0
        %883 = vmatprep.subr.mxu0 0.0
        %884 = vmatpush1.msra.mxu0 0.0
        %885 = vmatprep.subr.mxu0 0.0
        %886 = vmatpush1.msra.mxu0 0.0
        %887 = vmatprep.subr.mxu0 0.0
        %888 = vmatpush1.msra.mxu0 0.0
        %889 = vmatprep.subr.mxu0 0.0
        %890 = vmatpush1.msra.mxu0 0.0
        %891 = vmatprep.subr.mxu0 0.0
        %892 = vmatpush1.msra.mxu0 0.0
        %893 = vmatprep.subr.mxu0 0.0
        %894 = vmatpush1.msra.mxu0 0.0
        %895 = vmatprep.subr.mxu0 0.0
        %896 = vmatpush1.msra.mxu0 0.0
        %897 = vmatprep.subr.mxu0 0.0
        %898 = vmatpush1.msra.mxu0 0.0
        %899 = vmatprep.subr.mxu0 0.0
        %900 = vmatpush1.msra.mxu0 0.0
        %901 = vmatprep.mubr.f32.mxu0 0.0
        %902 = vmatmul.mubr.f32.gmra.mrb[0].mxu0 %v790
        %v903 = vpop.f32.mrb[0].mxu0
        %v904 = vadd.f32 0.0, %v903
        %v905 = vpop.f32.mrb[0].mxu0
        %906 = vmatprep.mubr.f32.mxu0 0.0
        %907 = vmatmul.mubr.f32.gmra.mrb[0].mxu0 %v793
        %v908 = vpop.f32.mrb[0].mxu0
        %v909 = vadd.f32 0.0, %v908
        %v910 = vpop.f32.mrb[0].mxu0
        %911 = vmatprep.mubr.f32.mxu0 0.0
        %912 = vmatmul.mubr.f32.gmra.mrb[0].mxu0 %v796
        %v913 = vpop.f32.mrb[0].mxu0
        %v914 = vadd.f32 0.0, %v913
        %v915 = vpop.f32.mrb[0].mxu0
        %916 = vmatprep.mubr.f32.mxu0 0.0
        %917 = vmatmul.mubr.f32.gmra.mrb[0].mxu0 %v799
        %v918 = vpop.f32.mrb[0].mxu0
        %v919 = vadd.f32 0.0, %v918
        %v920 = vpop.f32.mrb[0].mxu0
        %921 = vmatprep.mubr.f32.mxu0 0.0
        %922 = vmatmul.mubr.f32.gmra.mrb[0].mxu0 %v802
        %v923 = vpop.f32.mrb[0].mxu0
        %v924 = vadd.f32 0.0, %v923
        %v925 = vpop.f32.mrb[0].mxu0
        %926 = vmatprep.mubr.f32.mxu0 0.0
        %927 = vmatmul.mubr.f32.gmra.mrb[0].mxu0 %v805
        %v928 = vpop.f32.mrb[0].mxu0
        %v929 = vadd.f32 0.0, %v928
        %v930 = vpop.f32.mrb[0].mxu0
        %931 = vmatprep.mubr.f32.mxu0 0.0
        %932 = vmatmul.mubr.f32.gmra.mrb[0].mxu0 %v808
        %v933 = vpop.f32.mrb[0].mxu0
        %v934 = vadd.f32 0.0, %v933
        %v935 = vpop.f32.mrb[0].mxu0
        %936 = vmatprep.mubr.f32.mxu0 0.0
        %937 = vmatmul.mubr.f32.gmra.mrb[0].mxu0 %v811
        %v938 = vpop.f32.mrb[0].mxu0
        %v939 = vadd.f32 0.0, %v938
        %v940 = vpop.f32.mrb[0].mxu0
        %941 = vmatprep.mubr.f32.mxu0 0.0
        %942 = vmatmul.mubr.f32.gmra.mrb[0].mxu0 %v814
        %v943 = vpop.f32.mrb[0].mxu0
        %v944 = vadd.f32 0.0, %v943
        %v945 = vpop.f32.mrb[0].mxu0
        %946 = vmatprep.mubr.f32.mxu0 0.0
        %947 = vmatmul.mubr.f32.gmra.mrb[0].mxu0 %v817
        %v948 = vpop.f32.mrb[0].mxu0
        %v949 = vadd.f32 0.0, %v948
        %v950 = vpop.f32.mrb[0].mxu0
        %951 = vmatprep.mubr.f32.mxu0 0.0
        %952 = vmatmul.mubr.f32.gmra.mrb[0].mxu0 %v820
        %v953 = vpop.f32.mrb[0].mxu0
        %v954 = vadd.f32 0.0, %v953
        %v955 = vpop.f32.mrb[0].mxu0
        %956 = vmatprep.mubr.f32.mxu0 0.0
        %957 = vmatmul.mubr.f32.gmra.mrb[0].mxu0 %v823
        %v958 = vpop.f32.mrb[0].mxu0
        %v959 = vadd.f32 0.0, %v958
        %v960 = vpop.f32.mrb[0].mxu0
        %961 = vmatprep.mubr.f32.mxu0 0.0
        %962 = vmatmul.mubr.f32.gmra.mrb[0].mxu0 %v826
        %v963 = vpop.f32.mrb[0].mxu0
        %v964 = vadd.f32 0.0, %v963
        %v965 = vpop.f32.mrb[0].mxu0
        %966 = vmatprep.mubr.f32.mxu0 0.0
        %967 = vmatmul.mubr.f32.gmra.mrb[0].mxu0 %v829
        %v968 = vpop.f32.mrb[0].mxu0
        %v969 = vadd.f32 0.0, %v968
        %v970 = vpop.f32.mrb[0].mxu0
        %971 = vmatprep.mubr.f32.mxu0 0.0
        %972 = vmatmul.mubr.f32.gmra.mrb[0].mxu0 %v832
        %v973 = vpop.f32.mrb[0].mxu0
        %v974 = vadd.f32 0.0, %v973
        %v975 = vpop.f32.mrb[0].mxu0
        %976 = vmatprep.mubr.f32.mxu0 0.0
        %977 = vmatmul.mubr.f32.gmra.mrb[0].mxu0 %v835
        %v978 = vpop.f32.mrb[0].mxu0
        %v979 = vadd.f32 0.0, %v978
        %v980 = vpop.f32.mrb[0].mxu0
        %981 = vdwg.mxu0
        %v982 = vlaneseq
        %v983 = vand.u32 %v982, 127
        %vm984 = vcmp.lt.s32.totalorder %v983, 32
        %v985 = vsel %vm984, %v904, -inf
        %v986 = vsel %vm984, %v909, -inf
        %v987 = vsel %vm984, %v914, -inf
        %v988 = vsel %vm984, %v919, -inf
        %v989 = vsel %vm984, %v924, -inf
        %v990 = vsel %vm984, %v929, -inf
        %v991 = vsel %vm984, %v934, -inf
        %v992 = vsel %vm984, %v939, -inf
        %v993 = vsel %vm984, %v944, -inf
        %v994 = vsel %vm984, %v949, -inf
        %v995 = vsel %vm984, %v954, -inf
        %v996 = vsel %vm984, %v959, -inf
        %v997 = vsel %vm984, %v964, -inf
        %v998 = vsel %vm984, %v969, -inf
        %v999 = vsel %vm984, %v974, -inf
        %v1000 = vsel %vm984, %v979, -inf
        %1001 = vmax.xlane.f32.xlu0 %v985
        %v1002 = vpop.xlane.xlu0 %1001
        %1003 = vmax.xlane.f32.xlu0 %v986
        %v1004 = vpop.xlane.xlu0 %1003
        %1005 = vmax.xlane.f32.xlu0 %v987
        %v1006 = vpop.xlane.xlu0 %1005
        %1007 = vmax.xlane.f32.xlu0 %v988
        %v1008 = vpop.xlane.xlu0 %1007
        %1009 = vmax.xlane.f32.xlu0 %v989
        %v1010 = vpop.xlane.xlu0 %1009
        %1011 = vmax.xlane.f32.xlu0 %v990
        %v1012 = vpop.xlane.xlu0 %1011
        %1013 = vmax.xlane.f32.xlu0 %v991
        %v1014 = vpop.xlane.xlu0 %1013
        %1015 = vmax.xlane.f32.xlu0 %v992
        %v1016 = vpop.xlane.xlu0 %1015
        %1017 = vmax.xlane.f32.xlu0 %v993
        %v1018 = vpop.xlane.xlu0 %1017
        %1019 = vmax.xlane.f32.xlu0 %v994
        %v1020 = vpop.xlane.xlu0 %1019
        %1021 = vmax.xlane.f32.xlu0 %v995
        %v1022 = vpop.xlane.xlu0 %1021
        %1023 = vmax.xlane.f32.xlu0 %v996
        %v1024 = vpop.xlane.xlu0 %1023
        %1025 = vmax.xlane.f32.xlu0 %v997
        %v1026 = vpop.xlane.xlu0 %1025
        %1027 = vmax.xlane.f32.xlu0 %v998
        %v1028 = vpop.xlane.xlu0 %1027
        %1029 = vmax.xlane.f32.xlu0 %v999
        %v1030 = vpop.xlane.xlu0 %1029
        %1031 = vmax.xlane.f32.xlu0 %v1000
        %v1032 = vpop.xlane.xlu0 %1031
        %v1033 = vsub.f32 %v985, %v1002
        %v1034 = vsub.f32 %v986, %v1004
        %v1035 = vsub.f32 %v987, %v1006
        %v1036 = vsub.f32 %v988, %v1008
        %v1037 = vsub.f32 %v989, %v1010
        %v1038 = vsub.f32 %v990, %v1012
        %v1039 = vsub.f32 %v991, %v1014
        %v1040 = vsub.f32 %v992, %v1016
        %v1041 = vsub.f32 %v993, %v1018
        %v1042 = vsub.f32 %v994, %v1020
        %v1043 = vsub.f32 %v995, %v1022
        %v1044 = vsub.f32 %v996, %v1024
        %v1045 = vsub.f32 %v997, %v1026
        %v1046 = vsub.f32 %v998, %v1028
        %v1047 = vsub.f32 %v999, %v1030
        %v1048 = vsub.f32 %v1000, %v1032
        %v1049 = vmul.f32 %v1033, 1.442695
        %v1050 = vpow.pop %v1049
        %v1051 = vmul.f32 %v1034, 1.442695
        %v1052 = vpow.pop %v1051
        %v1053 = vmul.f32 %v1035, 1.442695
        %v1054 = vpow.pop %v1053
        %v1055 = vmul.f32 %v1036, 1.442695
        %v1056 = vpow.pop %v1055
        %v1057 = vmul.f32 %v1037, 1.442695
        %v1058 = vpow.pop %v1057
        %v1059 = vmul.f32 %v1038, 1.442695
        %v1060 = vpow.pop %v1059
        %v1061 = vmul.f32 %v1039, 1.442695
        %v1062 = vpow.pop %v1061
        %v1063 = vmul.f32 %v1040, 1.442695
        %v1064 = vpow.pop %v1063
        %v1065 = vmul.f32 %v1041, 1.442695
        %v1066 = vpow.pop %v1065
        %v1067 = vmul.f32 %v1042, 1.442695
        %v1068 = vpow.pop %v1067
        %v1069 = vmul.f32 %v1043, 1.442695
        %v1070 = vpow.pop %v1069
        %v1071 = vmul.f32 %v1044, 1.442695
        %v1072 = vpow.pop %v1071
        %v1073 = vmul.f32 %v1045, 1.442695
        %v1074 = vpow.pop %v1073
        %v1075 = vmul.f32 %v1046, 1.442695
        %v1076 = vpow.pop %v1075
        %v1077 = vmul.f32 %v1047, 1.442695
        %v1078 = vpow.pop %v1077
        %v1079 = vmul.f32 %v1048, 1.442695
        %v1080 = vpow.pop %v1079
        %1081 = vadd.xlane.f32.xlu0 %v1050
        %v1082 = vpop.xlane.xlu0 %1081
        %1083 = vadd.xlane.f32.xlu0 %v1052
        %v1084 = vpop.xlane.xlu0 %1083
        %1085 = vadd.xlane.f32.xlu0 %v1054
        %v1086 = vpop.xlane.xlu0 %1085
        %1087 = vadd.xlane.f32.xlu0 %v1056
        %v1088 = vpop.xlane.xlu0 %1087
        %1089 = vadd.xlane.f32.xlu0 %v1058
        %v1090 = vpop.xlane.xlu0 %1089
        %1091 = vadd.xlane.f32.xlu0 %v1060
        %v1092 = vpop.xlane.xlu0 %1091
        %1093 = vadd.xlane.f32.xlu0 %v1062
        %v1094 = vpop.xlane.xlu0 %1093
        %1095 = vadd.xlane.f32.xlu0 %v1064
        %v1096 = vpop.xlane.xlu0 %1095
        %1097 = vadd.xlane.f32.xlu0 %v1066
        %v1098 = vpop.xlane.xlu0 %1097
        %1099 = vadd.xlane.f32.xlu0 %v1068
        %v1100 = vpop.xlane.xlu0 %1099
        %1101 = vadd.xlane.f32.xlu0 %v1070
        %v1102 = vpop.xlane.xlu0 %1101
        %1103 = vadd.xlane.f32.xlu0 %v1072
        %v1104 = vpop.xlane.xlu0 %1103
        %1105 = vadd.xlane.f32.xlu0 %v1074
        %v1106 = vpop.xlane.xlu0 %1105
        %1107 = vadd.xlane.f32.xlu0 %v1076
        %v1108 = vpop.xlane.xlu0 %1107
        %1109 = vadd.xlane.f32.xlu0 %v1078
        %v1110 = vpop.xlane.xlu0 %1109
        %1111 = vadd.xlane.f32.xlu0 %v1080
        %v1112 = vpop.xlane.xlu0 %1111
        %v1113 = vrcp.pop %v1082
        %v1114 = vrcp.pop %v1084
        %v1115 = vrcp.pop %v1086
        %v1116 = vrcp.pop %v1088
        %v1117 = vrcp.pop %v1090
        %v1118 = vrcp.pop %v1092
        %v1119 = vrcp.pop %v1094
        %v1120 = vrcp.pop %v1096
        %v1121 = vrcp.pop %v1098
        %v1122 = vrcp.pop %v1100
        %v1123 = vrcp.pop %v1102
        %v1124 = vrcp.pop %v1104
        %v1125 = vrcp.pop %v1106
        %v1126 = vrcp.pop %v1108
        %v1127 = vrcp.pop %v1110
        %v1128 = vrcp.pop %v1112
        %v1129 = vmul.f32 %v1050, %v1113
        %v1130 = vmul.f32 %v1052, %v1114
        %v1131 = vmul.f32 %v1054, %v1115
        %v1132 = vmul.f32 %v1056, %v1116
        %v1133 = vmul.f32 %v1058, %v1117
        %v1134 = vmul.f32 %v1060, %v1118
        %v1135 = vmul.f32 %v1062, %v1119
        %v1136 = vmul.f32 %v1064, %v1120
        %v1137 = vmul.f32 %v1066, %v1121
        %v1138 = vmul.f32 %v1068, %v1122
        %v1139 = vmul.f32 %v1070, %v1123
        %v1140 = vmul.f32 %v1072, %v1124
        %v1141 = vmul.f32 %v1074, %v1125
        %v1142 = vmul.f32 %v1076, %v1126
        %v1143 = vmul.f32 %v1078, %v1127
        %v1144 = vmul.f32 %v1080, %v1128
        %1145 = vmatprep.subr.mxu0 0.0
        %1146 = vmatpush1.xpose.msra.mxu0 %v1129
        %1147 = vmatprep.subr.mxu0 0.0
        %1148 = vmatpush1.xpose.msra.mxu0 %v1130
        %1149 = vmatprep.subr.mxu0 0.0
        %1150 = vmatpush1.xpose.msra.mxu0 %v1131
        %1151 = vmatprep.subr.mxu0 0.0
        %1152 = vmatpush1.xpose.msra.mxu0 %v1132
        %1153 = vmatprep.subr.mxu0 0.0
        %1154 = vmatpush1.xpose.msra.mxu0 %v1133
        %1155 = vmatprep.subr.mxu0 0.0
        %1156 = vmatpush1.xpose.msra.mxu0 %v1134
        %1157 = vmatprep.subr.mxu0 0.0
        %1158 = vmatpush1.xpose.msra.mxu0 %v1135
        %1159 = vmatprep.subr.mxu0 0.0
        %1160 = vmatpush1.xpose.msra.mxu0 %v1136
        %1161 = vmatprep.subr.mxu0 0.0
        %1162 = vmatpush1.xpose.msra.mxu0 %v1137
        %1163 = vmatprep.subr.mxu0 0.0
        %1164 = vmatpush1.xpose.msra.mxu0 %v1138
        %1165 = vmatprep.subr.mxu0 0.0
        %1166 = vmatpush1.xpose.msra.mxu0 %v1139
        %1167 = vmatprep.subr.mxu0 0.0
        %1168 = vmatpush1.xpose.msra.mxu0 %v1140
        %1169 = vmatprep.subr.mxu0 0.0
        %1170 = vmatpush1.xpose.msra.mxu0 %v1141
        %1171 = vmatprep.subr.mxu0 0.0
        %1172 = vmatpush1.xpose.msra.mxu0 %v1142
        %1173 = vmatprep.subr.mxu0 0.0
        %1174 = vmatpush1.xpose.msra.mxu0 %v1143
        %1175 = vmatprep.subr.mxu0 0.0
        %1176 = vmatpush1.xpose.msra.mxu0 %v1144
        %1177 = vmatprep.subr.mxu0 0.0
        %1178 = vmatpush1.xpose.msra.mxu0 0.0
        %1179 = vmatprep.subr.mxu0 0.0
        %1180 = vmatpush1.xpose.msra.mxu0 0.0
        %1181 = vmatprep.subr.mxu0 0.0
        %1182 = vmatpush1.xpose.msra.mxu0 0.0
        %1183 = vmatprep.subr.mxu0 0.0
        %1184 = vmatpush1.xpose.msra.mxu0 0.0
        %1185 = vmatprep.subr.mxu0 0.0
        %1186 = vmatpush1.xpose.msra.mxu0 0.0
        %1187 = vmatprep.subr.mxu0 0.0
        %1188 = vmatpush1.xpose.msra.mxu0 0.0
        %1189 = vmatprep.subr.mxu0 0.0
        %1190 = vmatpush1.xpose.msra.mxu0 0.0
        %1191 = vmatprep.subr.mxu0 0.0
        %1192 = vmatpush1.xpose.msra.mxu0 0.0
        %1193 = vmatprep.subr.mxu0 0.0
        %1194 = vmatpush1.xpose.msra.mxu0 0.0
        %1195 = vmatprep.subr.mxu0 0.0
        %1196 = vmatpush1.xpose.msra.mxu0 0.0
        %1197 = vmatprep.subr.mxu0 0.0
        %1198 = vmatpush1.xpose.msra.mxu0 0.0
        %1199 = vmatprep.subr.mxu0 0.0
        %1200 = vmatpush1.xpose.msra.mxu0 0.0
        %1201 = vmatprep.subr.mxu0 0.0
        %1202 = vmatpush1.xpose.msra.mxu0 0.0
        %1203 = vmatprep.subr.mxu0 0.0
        %1204 = vmatpush1.xpose.msra.mxu0 0.0
        %1205 = vmatprep.subr.mxu0 0.0
        %1206 = vmatpush1.xpose.msra.mxu0 0.0
        %1207 = vmatprep.subr.mxu0 0.0
        %1208 = vmatpush1.xpose.msra.mxu0 0.0
        %1209 = vmatprep.mubr.f32.mxu0 0.0
        %1210 = vmatmul.mubr.f32.gmra.mrb[0].mxu0 %v752
        %v1211 = vpop.f32.mrb[0].mxu0
        %v1212 = vadd.f32 0.0, %v1211
        %v1213 = vpop.f32.mrb[0].mxu0
        %1214 = vmatprep.mubr.f32.mxu0 0.0
        %1215 = vmatmul.mubr.f32.gmra.mrb[0].mxu0 %v753
        %v1216 = vpop.f32.mrb[0].mxu0
        %v1217 = vadd.f32 0.0, %v1216
        %v1218 = vpop.f32.mrb[0].mxu0
        %1219 = vmatprep.mubr.f32.mxu0 0.0
        %1220 = vmatmul.mubr.f32.gmra.mrb[0].mxu0 %v754
        %v1221 = vpop.f32.mrb[0].mxu0
        %v1222 = vadd.f32 0.0, %v1221
        %v1223 = vpop.f32.mrb[0].mxu0
        %1224 = vmatprep.mubr.f32.mxu0 0.0
        %1225 = vmatmul.mubr.f32.gmra.mrb[0].mxu0 %v755
        %v1226 = vpop.f32.mrb[0].mxu0
        %v1227 = vadd.f32 0.0, %v1226
        %v1228 = vpop.f32.mrb[0].mxu0
        %1229 = vdwg.mxu0
        %v1230 = vld [vmem:[%s6] sm:$0xff]
        %v1231 = vld [vmem:[%s6 + $0x8] sm:$0xff]
        %v1232 = vld [vmem:[%s6 + $0x10] sm:$0xff]
        %v1233 = vld [vmem:[%s6 + $0x18] sm:$0xff]
        %v1234 = vld [vmem:[%s7] sm:$0xf]
        %1236 = vset.pattern.permute.xlu0 0
        %1237 = vperm.xlu0 %1236, %v1234
        %v1238 = vpop.permute.xlu0 %1237
        %1240 = vxpose.xlu0.b32.start [1/16] %v1230, 128
        %1241 = vxpose.xlu0.b32.cont [2/16] %v1231, 128
        %1242 = vxpose.xlu0.b32.cont [3/16] %v1232, 128
        %1243 = vxpose.xlu0.b32.cont [4/16] %v1233, 128
        %1244 = vxpose.xlu0.b32.cont [5/16] 0.0, 128
        %1245 = vxpose.xlu0.b32.cont [6/16] 0.0, 128
        %1246 = vxpose.xlu0.b32.cont [7/16] 0.0, 128
        %1247 = vxpose.xlu0.b32.cont [8/16] 0.0, 128
        %1248 = vxpose.xlu0.b32.cont [9/16] 0.0, 128
        %1249 = vxpose.xlu0.b32.cont [10/16] 0.0, 128
        %1250 = vxpose.xlu0.b32.cont [11/16] 0.0, 128
        %1251 = vxpose.xlu0.b32.cont [12/16] 0.0, 128
        %1252 = vxpose.xlu0.b32.cont [13/16] 0.0, 128
        %1253 = vxpose.xlu0.b32.cont [14/16] 0.0, 128
        %1254 = vxpose.xlu0.b32.cont [15/16] 0.0, 128
        %1255 = vxpose.xlu0.b32.end [16/16] 0.0, 128
        %v1256 = vpop.trf.xlu0
        %v1257 = vpop.trf.xlu0
        %v1258 = vpop.trf.xlu0
        %v1259 = vpop.trf.xlu0
        %v1260 = vpop.trf.xlu0
        %v1261 = vpop.trf.xlu0
        %v1262 = vpop.trf.xlu0
        %v1263 = vpop.trf.xlu0
        %v1264 = vpop.trf.xlu0
        %v1265 = vpop.trf.xlu0
        %v1266 = vpop.trf.xlu0
        %v1267 = vpop.trf.xlu0
        %v1268 = vpop.trf.xlu0
        %v1269 = vpop.trf.xlu0
        %v1270 = vpop.trf.xlu0
        %v1271 = vpop.trf.xlu0
        %v1273 = vsel %vm788, %v1256, 0
        %1275 = vmatprep.subr.mxu0 0.0
        %1276 = vmatpush1.msra.mxu0 %v1212
        %1277 = vmatprep.subr.mxu0 0.0
        %1278 = vmatpush1.msra.mxu0 %v1217
        %1279 = vmatprep.subr.mxu0 0.0
        %1280 = vmatpush1.msra.mxu0 %v1222
        %1281 = vmatprep.subr.mxu0 0.0
        %1282 = vmatpush1.msra.mxu0 %v1227
        %1283 = vmatprep.subr.mxu0 0.0
        %1284 = vmatpush1.msra.mxu0 0.0
        %1285 = vmatprep.subr.mxu0 0.0
        %1286 = vmatpush1.msra.mxu0 0.0
        %1287 = vmatprep.subr.mxu0 0.0
        %1288 = vmatpush1.msra.mxu0 0.0
        %1289 = vmatprep.subr.mxu0 0.0
        %1290 = vmatpush1.msra.mxu0 0.0
        %1291 = vmatprep.subr.mxu0 0.0
        %1292 = vmatpush1.msra.mxu0 0.0
        %1293 = vmatprep.subr.mxu0 0.0
        %1294 = vmatpush1.msra.mxu0 0.0
        %1295 = vmatprep.subr.mxu0 0.0
        %1296 = vmatpush1.msra.mxu0 0.0
        %1297 = vmatprep.subr.mxu0 0.0
        %1298 = vmatpush1.msra.mxu0 0.0
        %1299 = vmatprep.subr.mxu0 0.0
        %1300 = vmatpush1.msra.mxu0 0.0
        %1301 = vmatprep.subr.mxu0 0.0
        %1302 = vmatpush1.msra.mxu0 0.0
        %1303 = vmatprep.subr.mxu0 0.0
        %1304 = vmatpush1.msra.mxu0 0.0
        %1305 = vmatprep.subr.mxu0 0.0
        %1306 = vmatpush1.msra.mxu0 0.0
        %1307 = vmatprep.subr.mxu0 0.0
        %1308 = vmatpush1.msra.mxu0 0.0
        %1309 = vmatprep.subr.mxu0 0.0
        %1310 = vmatpush1.msra.mxu0 0.0
        %1311 = vmatprep.subr.mxu0 0.0
        %1312 = vmatpush1.msra.mxu0 0.0
        %1313 = vmatprep.subr.mxu0 0.0
        %1314 = vmatpush1.msra.mxu0 0.0
        %1315 = vmatprep.subr.mxu0 0.0
        %1316 = vmatpush1.msra.mxu0 0.0
        %1317 = vmatprep.subr.mxu0 0.0
        %1318 = vmatpush1.msra.mxu0 0.0
        %1319 = vmatprep.subr.mxu0 0.0
        %1320 = vmatpush1.msra.mxu0 0.0
        %1321 = vmatprep.subr.mxu0 0.0
        %1322 = vmatpush1.msra.mxu0 0.0
        %1323 = vmatprep.subr.mxu0 0.0
        %1324 = vmatpush1.msra.mxu0 0.0
        %1325 = vmatprep.subr.mxu0 0.0
        %1326 = vmatpush1.msra.mxu0 0.0
        %1327 = vmatprep.subr.mxu0 0.0
        %1328 = vmatpush1.msra.mxu0 0.0
        %1329 = vmatprep.subr.mxu0 0.0
        %1330 = vmatpush1.msra.mxu0 0.0
        %1331 = vmatprep.subr.mxu0 0.0
        %1332 = vmatpush1.msra.mxu0 0.0
        %1333 = vmatprep.subr.mxu0 0.0
        %1334 = vmatpush1.msra.mxu0 0.0
        %1335 = vmatprep.subr.mxu0 0.0
        %1336 = vmatpush1.msra.mxu0 0.0
        %1337 = vmatprep.subr.mxu0 0.0
        %1338 = vmatpush1.msra.mxu0 0.0
        %1339 = vmatprep.mubr.f32.mxu0 0.0
        %1340 = vmatmul.mubr.f32.gmra.mrb[0].mxu0 %v1273
        %v1341 = vpop.f32.mrb[0].mxu0
        %v1342 = vadd.f32 %v1238, %v1341
        %v1343 = vpop.f32.mrb[0].mxu0
        %1344 = vdwg.mxu0
        %v1345 = vadd.f32 %v588, %v1342
        %1346 = vst [vmem:[%s345] sm:$0xf] %v1345
        %s1347 = sand.u32 %s235, 1
        %s1348 = scalar_lea.sflag [#allocation4], %s1347
        %s1349 = sand.u32 %s235, 1
        %s1350 = smul.addr %s1349, 4
        %s1351 = scalar_lea.vmem [#allocation3], %s1350
        // Predicated region
        $region57: #{tpu_custom_call.1} parent=51 // pred_check
          %p1352 = pneg %p245
        $region58: #{tpu_custom_call.1} parent=51 // pred_check_branch
          %1354 = sbr.rel (%p1352) target = $region60
        $region59: #{tpu_custom_call.1} parent=51 // pred_region
          %s1355 = sadd.s32 %s28, %s29
          %s1357 = ssub.s32 64, 64
          %1358 = vsyncadd %s1348, %s1357
          %s1359 = sadd.s32 %s1355, %s27
          %s1360 = smul.addr %s1359, 64
          %s1361 = scalar_lea.hbm %s8, %s1360
          %s1363 = sshll.u32 %s1351, 4
          %s1364 = int_to_ptr.vmem [resolvable:$true] %s1363
          %1366 = dma.vmem_to_hbm [thread:$0]  %s1364, 64, %s1361, %s1348
        $region60: #{tpu_custom_call.1} parent=51 // pred_fallthru
          _
      $region52: #{tpu_custom_call.1} parent=5 // pred_fallthru
        _
      %p1367 = scmp.le.s32.totalorder 2, %s17
      // Predicated region
      $region61: #{tpu_custom_call.1} parent=5 // pred_check
        %p1368 = pneg %p1367
      $region62: #{tpu_custom_call.1} parent=5 // pred_check_branch
        %1370 = sbr.rel (%p1368) target = $region64
      $region63: #{tpu_custom_call.1} parent=5 // pred_region
        %s1371 = ssub.s32 %s17, 2
        // Predicated region
        $region65: #{tpu_custom_call.1} parent=63 // pred_check
          %p1372 = pneg %p251
        $region66: #{tpu_custom_call.1} parent=63 // pred_check_branch
          %1374 = sbr.rel (%p1372) target = $region68
        $region67: #{tpu_custom_call.1} parent=63 // pred_region
          %s1375 = sand.u32 %s236, 1
          %s1376 = scalar_lea.sflag [#allocation4], %s1375
          %s1377 = sand.u32 %s236, 1
          %s1378 = smul.addr %s1377, 4
          %s1379 = scalar_lea.vmem [#allocation3], %s1378
          %1380 = dma.done %s1376, 64
        $region68: #{tpu_custom_call.1} parent=63 // pred_fallthru
          _
      $region64: #{tpu_custom_call.1} parent=5 // pred_fallthru
        _
    $region6: #{tpu_custom_call.1} parent=1 // loop_footer
      %s21 = sadd.s32 1, %s17
    $region7: #{tpu_custom_call.1} parent=1 // loop_footer_branch
      %16 = sbr.rel target = $region3
    $region8: #{tpu_custom_call.1} parent=1 // loop_exit
      _
    %1381 = vsyncpa [#allocation4], 1
    %s1382 = scalar_lea.sflag [#allocation4], 1
    %1383 = vsyncpa %s1382, 1

</llo_original>
